<compile_context>
chip_gen: v7x
topology: tpu7x:2x2x1
jax: 0.10.0
libtpu: 0.0.40
codegen_flags: <defaults>
</compile_context>

<pallas_src>
from functools import partial
import math

import jax
import jax.numpy as jnp
from jax import lax
from jax.experimental import pallas as pl
from jax.experimental.pallas import tpu as pltpu


def text2sql_fused_kernel(src_ref, tgt_ref, tid_ref, wqkv_ref, wo_ref, bo_ref,
                          wdq_ref, wout_ref, bout_ref, out_ref,
                          dctx_sc, m_sc, l_sc, tlog_sc):
    f32, bf16 = jnp.float32, jnp.bfloat16
    kv = pl.program_id(1)                      # vocab-tile (reduction) step
    H = wo_ref.shape[0]

    # ------------- k == 0: encoder + decoder context for this batch tile -------------
    @pl.when(kv == 0)
    def _encode_decode():
        Bt, S, E = src_ref.shape
        T = tgt_ref.shape[1]

        # Encoder: fused QKV projection (batch folded into M for MXU row utilization),
        # then per-batch-element attention (no O(B^2) block-diagonal masking).
        x = src_ref[...].reshape(Bt * S, E)                                   # bf16
        qkv = jnp.dot(x, wqkv_ref[...], preferred_element_type=f32)           # (Bt*S, 3H)
        q = qkv[:, :H].reshape(Bt, S, H).astype(bf16)      # 1/sqrt(H) folded into Wq
        k = qkv[:, H:2 * H].reshape(Bt, S, H).astype(bf16)
        v = qkv[:, 2 * H:].reshape(Bt, S, H).astype(bf16)
        s = jnp.einsum('bqh,bkh->bqk', q, k, preferred_element_type=f32)      # (Bt,S,S)
        s = s - jnp.max(s, axis=-1, keepdims=True)
        p = jnp.exp(s)
        p = p * pl.reciprocal(jnp.sum(p, axis=-1, keepdims=True), approx=True)
        ctx = jnp.einsum('bqk,bkh->bqh', p.astype(bf16), v,
                         preferred_element_type=f32).reshape(Bt * S, H)
        mem = jnp.dot(ctx.astype(bf16), wo_ref[...],
                      preferred_element_type=f32) + bo_ref[...]
        mem = jnp.maximum(mem, 0.0).reshape(Bt, S, H).astype(bf16)            # ReLU

        # Decoder: cross-attention over the encoder memory.
        t = tgt_ref[...].reshape(Bt * T, E)
        dq = jnp.dot(t, wdq_ref[...], preferred_element_type=f32)
        dq = dq.reshape(Bt, T, H).astype(bf16)             # 1/sqrt(H) folded into Wdq
        s2 = jnp.einsum('bqh,bkh->bqk', dq, mem, preferred_element_type=f32)  # (Bt,T,S)
        s2 = s2 - jnp.max(s2, axis=-1, keepdims=True)
        p2 = jnp.exp(s2)
        p2 = p2 * pl.reciprocal(jnp.sum(p2, axis=-1, keepdims=True), approx=True)
        dctx_sc[...] = jnp.einsum('bqk,bkh->bqh', p2.astype(bf16), mem,
                                  preferred_element_type=f32).reshape(Bt * T, H)

        # Init online-logsumexp running stats for the V-tiled cross-entropy.
        m_sc[...] = jnp.full(m_sc.shape, -1e30, dtype=f32)
        l_sc[...] = jnp.zeros(l_sc.shape, dtype=f32)
        tlog_sc[...] = jnp.zeros(tlog_sc.shape, dtype=f32)

    # ------- every k: vocab-tiled output projection + online logsumexp + gather -------
    # (At scale this stage is EUP-bound — one exp per logit — not MXU-bound; the
    #  streamed Wout tile keeps the matmul of tile k+1 overlapped with exp of tile k.)
    VT = wout_ref.shape[1]
    logits = jnp.dot(dctx_sc[...].astype(bf16), wout_ref[...],
                     preferred_element_type=f32) + bout_ref[...]              # (Mt, VT)
    m_prev = m_sc[...]
    m_new = jnp.maximum(m_prev, jnp.max(logits, axis=-1, keepdims=True))
    l_sc[...] = jnp.exp(m_prev - m_new) * l_sc[...] + \
        jnp.sum(jnp.exp(logits - m_new), axis=-1, keepdims=True)
    m_sc[...] = m_new

    tid = tid_ref[...].reshape(-1, 1)                                         # (Mt, 1)
    vid = kv * VT + lax.broadcasted_iota(jnp.int32, logits.shape, 1)
    tlog_sc[...] += jnp.sum(jnp.where(vid == tid, logits, 0.0),
                            axis=-1, keepdims=True)

    # ------------- k == last: per-batch-tile partial NLL sum (lane-dense) -------------
    @pl.when(kv == pl.num_programs(1) - 1)
    def _finalize():
        nll = m_sc[...] + jnp.log(l_sc[...]) - tlog_sc[...]                   # (Mt, 1)
        out_ref[...] = jnp.broadcast_to(jnp.sum(nll), out_ref.shape)


def text2sql_loss(params, src_ids, tgt_ids, *, b_tile=2, v_tile=256):
    """Training forward: scalar mean cross-entropy loss, like Text2SQL.forward(batch)."""
    B, S = src_ids.shape
    _, T = tgt_ids.shape
    E = params["src_embed"].shape[1]
    H = params["wo"].shape[0]
    V = params["wout"].shape[1]
    assert B % b_tile == 0 and V % v_tile == 0

    # Embedding lookups (XLA gather, fused into the surrounding jit).
    # TODO(synk): fuse into the kernel via scalar-prefetched ids + pl.Element row gather
    # once the tables are large enough for the extra HBM round-trip to matter.
    src_x = params["src_embed"][src_ids].astype(jnp.bfloat16)                 # (B,S,E)
    tgt_x = params["tgt_embed"][tgt_ids].astype(jnp.bfloat16)                 # (B,T,E)
    tid = tgt_ids[..., None].astype(jnp.int32)                                # (B,T,1)

    nb, nv = B // b_tile, V // v_tile

    # Grid-invariant operands: single-buffered (no wasted double-buffer VMEM).
    def inv(shape):
        return pl.BlockSpec(shape, lambda i, k: (0,) * len(shape),
                            pipeline_mode=pl.Buffered(1))

    out = pl.pallas_call(
        text2sql_fused_kernel,
        out_shape=jax.ShapeDtypeStruct((nb, 1, 128), jnp.float32),
        grid_spec=pltpu.PrefetchScalarGridSpec(
            num_scalar_prefetch=0,
            # Outer "parallel" axis over batch tiles (megacore), inner "arbitrary"
            # reduction axis over vocab tiles.  Size b_tile so b_tile*S >= 256 on
            # v6e/v7x (>=128 on v5e) at realistic shapes; size v_tile so the
            # (b_tile*T, v_tile) f32 logits tile x 2 buffers fits scoped VMEM
            # (halve for v7x's 64 MiB).
            grid=(nb, nv),
            in_specs=[
                pl.BlockSpec((b_tile, S, E), lambda i, k: (i, 0, 0)),         # src emb
                pl.BlockSpec((b_tile, T, E), lambda i, k: (i, 0, 0)),         # tgt emb
                pl.BlockSpec((b_tile, T, 1), lambda i, k: (i, 0, 0)),         # tgt ids
                inv((E, 3 * H)),                                              # Wq|Wk|Wv
                inv((H, H)),                                                  # Wo
                inv((1, H)),                                                  # bo
                inv((E, H)),                                                  # Wdq
                pl.BlockSpec((H, v_tile), lambda i, k: (0, k)),               # Wout tile
                pl.BlockSpec((1, v_tile), lambda i, k: (0, k)),               # bout tile
            ],
            out_specs=pl.BlockSpec((1, 1, 128), lambda i, k: (i, 0, 0)),
            scratch_shapes=[
                pltpu.VMEM((b_tile * T, H), jnp.float32),   # decoder context (resident over V)
                pltpu.VMEM((b_tile * T, 1), jnp.float32),   # running max
                pltpu.VMEM((b_tile * T, 1), jnp.float32),   # running sum-exp
                pltpu.VMEM((b_tile * T, 1), jnp.float32),   # gathered target logit
            ],
        ),
        compiler_params=pltpu.CompilerParams(
            dimension_semantics=("parallel", "arbitrary"),
            vmem_limit_bytes=32 * 1024 * 1024,   # raise v5e's 16 MiB scoped default
        ),
    )(src_x, tgt_x, tid, params["wqkv"], params["wo"], params["bo"],
      params["wdq"], params["wout"], params["bout"])

    # Tiny cross-tile reduction outside the kernel (partial sums per batch tile).
    return jnp.sum(out[:, 0, 0]) / (B * T)


def text2sql_loss_ref(params, src_ids, tgt_ids):
    """Pure-JAX f32 reference of the same synthetic forward (for tolerance check)."""
    f32, bf16 = jnp.float32, jnp.bfloat16
    x = params["src_embed"][src_ids].astype(bf16).astype(f32)
    qkv = x @ params["wqkv"].astype(f32)
    q, k, v = jnp.split(qkv, 3, axis=-1)
    p = jax.nn.softmax(jnp.einsum('bqh,bkh->bqk', q, k), axis=-1)
    ctx = jnp.einsum('bqk,bkh->bqh', p, v)
    mem = jnp.maximum(ctx @ params["wo"].astype(f32) + params["bo"], 0.0)
    t = params["tgt_embed"][tgt_ids].astype(bf16).astype(f32)
    dq = t @ params["wdq"].astype(f32)
    p2 = jax.nn.softmax(jnp.einsum('bqh,bkh->bqk', dq, mem), axis=-1)
    dctx = jnp.einsum('bqk,bkh->bqh', p2, mem)
    logits = dctx @ params["wout"].astype(f32) + params["bout"]
    logp = jax.nn.log_softmax(logits, axis=-1)
    nll = -jnp.take_along_axis(logp, tgt_ids[..., None], axis=-1)
    return jnp.mean(nll)


def init_params(key, n_src_vocab, n_tgt_vocab, E, H, V):
    ks = jax.random.split(key, 8)
    s = 0.02
    inv_sqrt_h = 1.0 / math.sqrt(H)             # attention scale folded into Wq / Wdq
    wq = s * inv_sqrt_h * jax.random.normal(ks[2], (E, H), jnp.float32)
    wk = s * jax.random.normal(ks[3], (E, H), jnp.float32)
    wv = s * jax.random.normal(ks[4], (E, H), jnp.float32)
    return {
        "src_embed": s * jax.random.normal(ks[0], (n_src_vocab, E), jnp.float32),
        "tgt_embed": s * jax.random.normal(ks[1], (n_tgt_vocab, E), jnp.float32),
        "wqkv": jnp.concatenate([wq, wk, wv], axis=1).astype(jnp.bfloat16),   # (E, 3H)
        "wo":   (s * jax.random.normal(ks[5], (H, H), jnp.float32)).astype(jnp.bfloat16),
        "bo":   jnp.zeros((1, H), jnp.float32),
        "wdq":  (s * inv_sqrt_h * jax.random.normal(ks[6], (E, H), jnp.float32)).astype(jnp.bfloat16),
        "wout": (s * jax.random.normal(ks[7], (H, V), jnp.float32)).astype(jnp.bfloat16),
        "bout": jnp.zeros((1, V), jnp.float32),
    }


if __name__ == "__main__":
    key = jax.random.PRNGKey(0)
    B, S, T = 4, 16, 16          # batch, source seq len, target seq len (small test)
    E, H, V = 128, 128, 512      # lane-dense embed dim, hidden dim, target vocab
    N_SRC_VOCAB = 64

    kp, k1, k2 = jax.random.split(key, 3)
    params = init_params(kp, N_SRC_VOCAB, V, E, H, V)
    src_ids = jax.random.randint(k1, (B, S), 0, N_SRC_VOCAB, dtype=jnp.int32)
    tgt_ids = jax.random.randint(k2, (B, T), 0, V, dtype=jnp.int32)

    loss = jax.jit(text2sql_loss)(params, src_ids, tgt_ids)
    jax.block_until_ready(loss)
    assert loss.shape == () and bool(jnp.isfinite(loss))

    ref = text2sql_loss_ref(params, src_ids, tgt_ids)
    assert abs(float(loss) - float(ref)) < 5e-2, (float(loss), float(ref))
    print("KERNEL_OK")
</pallas_src>

<mosaic_0001>
module attributes {stable_mosaic.version = 11 : i64} {
  func.func @text2sql_fused_kernel(%arg0: i32, %arg1: i32, %arg2: memref<2x16x128xbf16, #tpu.memory_space<vmem>>, %arg3: memref<2x16x128xbf16, #tpu.memory_space<vmem>>, %arg4: memref<2x16x1xi32, #tpu.memory_space<vmem>>, %arg5: memref<128x384xbf16, #tpu.memory_space<vmem>>, %arg6: memref<128x128xbf16, #tpu.memory_space<vmem>>, %arg7: memref<1x128xf32, #tpu.memory_space<vmem>>, %arg8: memref<128x128xbf16, #tpu.memory_space<vmem>>, %arg9: memref<128x256xbf16, #tpu.memory_space<vmem>>, %arg10: memref<1x256xf32, #tpu.memory_space<vmem>>, %arg11: memref<1x1x128xf32, #tpu.memory_space<vmem>>, %arg12: memref<32x128xf32, #tpu.memory_space<vmem>>, %arg13: memref<32x1xf32, #tpu.memory_space<vmem>>, %arg14: memref<32x1xf32, #tpu.memory_space<vmem>>, %arg15: memref<32x1xf32, #tpu.memory_space<vmem>>) attributes {dimension_semantics = [#tpu.dimension_semantics<parallel>, #tpu.dimension_semantics<arbitrary>], iteration_bounds = array<i64: 2, 2>, scalar_prefetch = 0 : i64, scratch_operands = 4 : i64, tpu.core_type = #tpu.core_type<tc>, window_params = [{transform_indices = @transform_0, window_bounds = array<i64: 2, 16, 128>}, {transform_indices = @transform_1, window_bounds = array<i64: 2, 16, 128>}, {transform_indices = @transform_2, window_bounds = array<i64: 2, 16, 1>}, {pipeline_mode = #tpu.pipeline_mode<synchronous>, transform_indices = @transform_3, window_bounds = array<i64: 128, 384>}, {pipeline_mode = #tpu.pipeline_mode<synchronous>, transform_indices = @transform_4, window_bounds = array<i64: 128, 128>}, {pipeline_mode = #tpu.pipeline_mode<synchronous>, transform_indices = @transform_5, window_bounds = array<i64: 1, 128>}, {pipeline_mode = #tpu.pipeline_mode<synchronous>, transform_indices = @transform_6, window_bounds = array<i64: 128, 128>}, {transform_indices = @transform_7, window_bounds = array<i64: 128, 256>}, {transform_indices = @transform_8, window_bounds = array<i64: 1, 256>}, {transform_indices = @transform_9, window_bounds = array<i64: 1, 1, 128>}]} {
    %c0_i32 = arith.constant 0 : i32
    %0 = arith.cmpi eq, %arg1, %c0_i32 : i32
    %1 = arith.extui %0 : i1 to i32
    %c0_i32_0 = arith.constant 0 : i32
    %2 = arith.cmpi ne, %1, %c0_i32_0 : i32
    scf.if %2 {
      %c0_26 = arith.constant 0 : index
      %c0_27 = arith.constant 0 : index
      %c0_28 = arith.constant 0 : index
      %44 = vector.load %arg2[%c0_26, %c0_27, %c0_28] : memref<2x16x128xbf16, #tpu.memory_space<vmem>>, vector<2x16x128xbf16>
      %45 = vector.shape_cast %44 : vector<2x16x128xbf16> to vector<32x128xbf16>
      %c0_29 = arith.constant 0 : index
      %c0_30 = arith.constant 0 : index
      %46 = vector.load %arg5[%c0_29, %c0_30] : memref<128x384xbf16, #tpu.memory_space<vmem>>, vector<128x384xbf16>
      %cst_31 = arith.constant dense<0.000000e+00> : vector<32x384xf32>
      %47 = tpu.matmul %45, %46, %cst_31 {dimension_numbers = #tpu.dot_dimension_numbers<[1], [0], [0], [1], [0, 0, 1, 1], [], []>} : vector<32x128xbf16>, vector<128x384xbf16>, vector<32x384xf32> -> vector<32x384xf32>
      %48 = vector.extract_strided_slice %47 {offsets = [0, 0], sizes = [32, 128], strides = [1, 1]} : vector<32x384xf32> to vector<32x128xf32>
      %49 = vector.shape_cast %48 : vector<32x128xf32> to vector<2x16x128xf32>
      %50 = arith.truncf %49 : vector<2x16x128xf32> to vector<2x16x128xbf16>
      %51 = vector.extract_strided_slice %47 {offsets = [0, 128], sizes = [32, 128], strides = [1, 1]} : vector<32x384xf32> to vector<32x128xf32>
      %52 = vector.shape_cast %51 : vector<32x128xf32> to vector<2x16x128xf32>
      %53 = arith.truncf %52 : vector<2x16x128xf32> to vector<2x16x128xbf16>
      %54 = vector.extract_strided_slice %47 {offsets = [0, 256], sizes = [32, 128], strides = [1, 1]} : vector<32x384xf32> to vector<32x128xf32>
      %55 = vector.shape_cast %54 : vector<32x128xf32> to vector<2x16x128xf32>
      %56 = arith.truncf %55 : vector<2x16x128xf32> to vector<2x16x128xbf16>
      "tpu.trace_start"() <{level = 10 : i32, message = "bqh,bkh->bqk"}> : () -> ()
      %cst_32 = arith.constant dense<0.000000e+00> : vector<2x16x16xf32>
      %57 = tpu.matmul %50, %53, %cst_32 {dimension_numbers = #tpu.dot_dimension_numbers<[2], [2], [1], [1], [0, 0, 0, 1, 1, 1], [0], [0]>} : vector<2x16x128xbf16>, vector<2x16x128xbf16>, vector<2x16x16xf32> -> vector<2x16x16xf32>
      "tpu.trace_stop"() : () -> ()
      %cst_33 = arith.constant dense<0xFF800000> : vector<2x16xf32>
      %58 = vector.multi_reduction <maximumf>, %57, %cst_33 [2] : vector<2x16x16xf32> to vector<2x16xf32>
      %59 = vector.shape_cast %58 : vector<2x16xf32> to vector<2x16x1xf32>
      %60 = vector.broadcast %59 : vector<2x16x1xf32> to vector<2x16x16xf32>
      %61 = arith.subf %57, %60 : vector<2x16x16xf32>
      %62 = math.exp %61 : vector<2x16x16xf32>
      %cst_34 = arith.constant dense<0.000000e+00> : vector<2x16xf32>
      %63 = vector.multi_reduction <add>, %62, %cst_34 [2] : vector<2x16x16xf32> to vector<2x16xf32>
      %64 = vector.shape_cast %63 : vector<2x16xf32> to vector<2x16x1xf32>
      %65 = tpu.reciprocal %64 {approx = true} : vector<2x16x1xf32> -> vector<2x16x1xf32>
      %66 = vector.broadcast %65 : vector<2x16x1xf32> to vector<2x16x16xf32>
      %67 = arith.mulf %62, %66 : vector<2x16x16xf32>
      %68 = arith.truncf %67 : vector<2x16x16xf32> to vector<2x16x16xbf16>
      "tpu.trace_start"() <{level = 10 : i32, message = "bqk,bkh->bqh"}> : () -> ()
      %cst_35 = arith.constant dense<0.000000e+00> : vector<2x16x128xf32>
      %69 = tpu.matmul %68, %56, %cst_35 {dimension_numbers = #tpu.dot_dimension_numbers<[2], [1], [1], [2], [0, 0, 0, 1, 1, 2], [0], [0]>} : vector<2x16x16xbf16>, vector<2x16x128xbf16>, vector<2x16x128xf32> -> vector<2x16x128xf32>
      "tpu.trace_stop"() : () -> ()
      %70 = vector.shape_cast %69 : vector<2x16x128xf32> to vector<32x128xf32>
      %71 = arith.truncf %70 : vector<32x128xf32> to vector<32x128xbf16>
      %c0_36 = arith.constant 0 : index
      %c0_37 = arith.constant 0 : index
      %72 = vector.load %arg6[%c0_36, %c0_37] : memref<128x128xbf16, #tpu.memory_space<vmem>>, vector<128x128xbf16>
      %cst_38 = arith.constant dense<0.000000e+00> : vector<32x128xf32>
      %73 = tpu.matmul %71, %72, %cst_38 {dimension_numbers = #tpu.dot_dimension_numbers<[1], [0], [0], [1], [0, 0, 1, 1], [], []>} : vector<32x128xbf16>, vector<128x128xbf16>, vector<32x128xf32> -> vector<32x128xf32>
      %c0_39 = arith.constant 0 : index
      %c0_40 = arith.constant 0 : index
      %74 = vector.load %arg7[%c0_39, %c0_40] : memref<1x128xf32, #tpu.memory_space<vmem>>, vector<1x128xf32>
      %75 = vector.broadcast %74 : vector<1x128xf32> to vector<32x128xf32>
      %76 = arith.addf %73, %75 : vector<32x128xf32>
      %cst_41 = arith.constant 0.000000e+00 : f32
      %77 = vector.broadcast %cst_41 : f32 to vector<32x128xf32>
      %78 = arith.maximumf %76, %77 : vector<32x128xf32>
      %79 = vector.shape_cast %78 : vector<32x128xf32> to vector<2x16x128xf32>
      %80 = arith.truncf %79 : vector<2x16x128xf32> to vector<2x16x128xbf16>
      %c0_42 = arith.constant 0 : index
      %c0_43 = arith.constant 0 : index
      %c0_44 = arith.constant 0 : index
      %81 = vector.load %arg3[%c0_42, %c0_43, %c0_44] : memref<2x16x128xbf16, #tpu.memory_space<vmem>>, vector<2x16x128xbf16>
      %82 = vector.shape_cast %81 : vector<2x16x128xbf16> to vector<32x128xbf16>
      %c0_45 = arith.constant 0 : index
      %c0_46 = arith.constant 0 : index
      %83 = vector.load %arg8[%c0_45, %c0_46] : memref<128x128xbf16, #tpu.memory_space<vmem>>, vector<128x128xbf16>
      %cst_47 = arith.constant dense<0.000000e+00> : vector<32x128xf32>
      %84 = tpu.matmul %82, %83, %cst_47 {dimension_numbers = #tpu.dot_dimension_numbers<[1], [0], [0], [1], [0, 0, 1, 1], [], []>} : vector<32x128xbf16>, vector<128x128xbf16>, vector<32x128xf32> -> vector<32x128xf32>
      %85 = vector.shape_cast %84 : vector<32x128xf32> to vector<2x16x128xf32>
      %86 = arith.truncf %85 : vector<2x16x128xf32> to vector<2x16x128xbf16>
      "tpu.trace_start"() <{level = 10 : i32, message = "bqh,bkh->bqk"}> : () -> ()
      %cst_48 = arith.constant dense<0.000000e+00> : vector<2x16x16xf32>
      %87 = tpu.matmul %86, %80, %cst_48 {dimension_numbers = #tpu.dot_dimension_numbers<[2], [2], [1], [1], [0, 0, 0, 1, 1, 1], [0], [0]>} : vector<2x16x128xbf16>, vector<2x16x128xbf16>, vector<2x16x16xf32> -> vector<2x16x16xf32>
      "tpu.trace_stop"() : () -> ()
      %cst_49 = arith.constant dense<0xFF800000> : vector<2x16xf32>
      %88 = vector.multi_reduction <maximumf>, %87, %cst_49 [2] : vector<2x16x16xf32> to vector<2x16xf32>
      %89 = vector.shape_cast %88 : vector<2x16xf32> to vector<2x16x1xf32>
      %90 = vector.broadcast %89 : vector<2x16x1xf32> to vector<2x16x16xf32>
      %91 = arith.subf %87, %90 : vector<2x16x16xf32>
      %92 = math.exp %91 : vector<2x16x16xf32>
      %cst_50 = arith.constant dense<0.000000e+00> : vector<2x16xf32>
      %93 = vector.multi_reduction <add>, %92, %cst_50 [2] : vector<2x16x16xf32> to vector<2x16xf32>
      %94 = vector.shape_cast %93 : vector<2x16xf32> to vector<2x16x1xf32>
      %95 = tpu.reciprocal %94 {approx = true} : vector<2x16x1xf32> -> vector<2x16x1xf32>
      %96 = vector.broadcast %95 : vector<2x16x1xf32> to vector<2x16x16xf32>
      %97 = arith.mulf %92, %96 : vector<2x16x16xf32>
      %98 = arith.truncf %97 : vector<2x16x16xf32> to vector<2x16x16xbf16>
      "tpu.trace_start"() <{level = 10 : i32, message = "bqk,bkh->bqh"}> : () -> ()
      %cst_51 = arith.constant dense<0.000000e+00> : vector<2x16x128xf32>
      %99 = tpu.matmul %98, %80, %cst_51 {dimension_numbers = #tpu.dot_dimension_numbers<[2], [1], [1], [2], [0, 0, 0, 1, 1, 2], [0], [0]>} : vector<2x16x16xbf16>, vector<2x16x128xbf16>, vector<2x16x128xf32> -> vector<2x16x128xf32>
      "tpu.trace_stop"() : () -> ()
      %100 = vector.shape_cast %99 : vector<2x16x128xf32> to vector<32x128xf32>
      %c0_52 = arith.constant 0 : index
      %c0_53 = arith.constant 0 : index
      %101 = vector.load %arg12[%c0_52, %c0_53] : memref<32x128xf32, #tpu.memory_space<vmem>>, vector<32x128xf32>
      tpu.vector_store %arg12[%c0_52, %c0_53], %100 {strides = array<i32>} : memref<32x128xf32, #tpu.memory_space<vmem>>, vector<32x128xf32>,
      %cst_54 = arith.constant -1.000000e+30 : f32
      %102 = vector.broadcast %cst_54 : f32 to vector<32x1xf32>
      %c0_55 = arith.constant 0 : index
      %c0_56 = arith.constant 0 : index
      %103 = vector.load %arg13[%c0_55, %c0_56] : memref<32x1xf32, #tpu.memory_space<vmem>>, vector<32x1xf32>
      tpu.vector_store %arg13[%c0_55, %c0_56], %102 {strides = array<i32>} : memref<32x1xf32, #tpu.memory_space<vmem>>, vector<32x1xf32>,
      %cst_57 = arith.constant 0.000000e+00 : f32
      %104 = vector.broadcast %cst_57 : f32 to vector<32x1xf32>
      %c0_58 = arith.constant 0 : index
      %c0_59 = arith.constant 0 : index
      %105 = vector.load %arg14[%c0_58, %c0_59] : memref<32x1xf32, #tpu.memory_space<vmem>>, vector<32x1xf32>
      tpu.vector_store %arg14[%c0_58, %c0_59], %104 {strides = array<i32>} : memref<32x1xf32, #tpu.memory_space<vmem>>, vector<32x1xf32>,
      %cst_60 = arith.constant 0.000000e+00 : f32
      %106 = vector.broadcast %cst_60 : f32 to vector<32x1xf32>
      %c0_61 = arith.constant 0 : index
      %c0_62 = arith.constant 0 : index
      %107 = vector.load %arg15[%c0_61, %c0_62] : memref<32x1xf32, #tpu.memory_space<vmem>>, vector<32x1xf32>
      tpu.vector_store %arg15[%c0_61, %c0_62], %106 {strides = array<i32>} : memref<32x1xf32, #tpu.memory_space<vmem>>, vector<32x1xf32>,
    } else {
    }
    %c0 = arith.constant 0 : index
    %c0_1 = arith.constant 0 : index
    %3 = vector.load %arg12[%c0, %c0_1] : memref<32x128xf32, #tpu.memory_space<vmem>>, vector<32x128xf32>
    %4 = arith.truncf %3 : vector<32x128xf32> to vector<32x128xbf16>
    %c0_2 = arith.constant 0 : index
    %c0_3 = arith.constant 0 : index
    %5 = vector.load %arg9[%c0_2, %c0_3] : memref<128x256xbf16, #tpu.memory_space<vmem>>, vector<128x256xbf16>
    %cst = arith.constant dense<0.000000e+00> : vector<32x256xf32>
    %6 = tpu.matmul %4, %5, %cst {dimension_numbers = #tpu.dot_dimension_numbers<[1], [0], [0], [1], [0, 0, 1, 1], [], []>} : vector<32x128xbf16>, vector<128x256xbf16>, vector<32x256xf32> -> vector<32x256xf32>
    %c0_4 = arith.constant 0 : index
    %c0_5 = arith.constant 0 : index
    %7 = vector.load %arg10[%c0_4, %c0_5] : memref<1x256xf32, #tpu.memory_space<vmem>>, vector<1x256xf32>
    %8 = vector.broadcast %7 : vector<1x256xf32> to vector<32x256xf32>
    %9 = arith.addf %6, %8 : vector<32x256xf32>
    %c0_6 = arith.constant 0 : index
    %c0_7 = arith.constant 0 : index
    %10 = vector.load %arg13[%c0_6, %c0_7] : memref<32x1xf32, #tpu.memory_space<vmem>>, vector<32x1xf32>
    %cst_8 = arith.constant dense<0xFF800000> : vector<32xf32>
    %11 = vector.multi_reduction <maximumf>, %9, %cst_8 [1] : vector<32x256xf32> to vector<32xf32>
    %12 = vector.shape_cast %11 : vector<32xf32> to vector<32x1xf32>
    %13 = arith.maximumf %10, %12 : vector<32x1xf32>
    %14 = arith.subf %10, %13 : vector<32x1xf32>
    %15 = math.exp %14 : vector<32x1xf32>
    %c0_9 = arith.constant 0 : index
    %c0_10 = arith.constant 0 : index
    %16 = vector.load %arg14[%c0_9, %c0_10] : memref<32x1xf32, #tpu.memory_space<vmem>>, vector<32x1xf32>
    %17 = arith.mulf %15, %16 : vector<32x1xf32>
    %18 = vector.broadcast %13 : vector<32x1xf32> to vector<32x256xf32>
    %19 = arith.subf %9, %18 : vector<32x256xf32>
    %20 = math.exp %19 : vector<32x256xf32>
    %cst_11 = arith.constant dense<0.000000e+00> : vector<32xf32>
    %21 = vector.multi_reduction <add>, %20, %cst_11 [1] : vector<32x256xf32> to vector<32xf32>
    %22 = vector.shape_cast %21 : vector<32xf32> to vector<32x1xf32>
    %23 = arith.addf %17, %22 : vector<32x1xf32>
    %c0_12 = arith.constant 0 : index
    %c0_13 = arith.constant 0 : index
    %24 = vector.load %arg14[%c0_12, %c0_13] : memref<32x1xf32, #tpu.memory_space<vmem>>, vector<32x1xf32>
    tpu.vector_store %arg14[%c0_12, %c0_13], %23 {strides = array<i32>} : memref<32x1xf32, #tpu.memory_space<vmem>>, vector<32x1xf32>,
    %c0_14 = arith.constant 0 : index
    %c0_15 = arith.constant 0 : index
    %25 = vector.load %arg13[%c0_14, %c0_15] : memref<32x1xf32, #tpu.memory_space<vmem>>, vector<32x1xf32>
    tpu.vector_store %arg13[%c0_14, %c0_15], %13 {strides = array<i32>} : memref<32x1xf32, #tpu.memory_space<vmem>>, vector<32x1xf32>,
    %c0_16 = arith.constant 0 : index
    %c0_17 = arith.constant 0 : index
    %c0_18 = arith.constant 0 : index
    %26 = vector.load %arg4[%c0_16, %c0_17, %c0_18] : memref<2x16x1xi32, #tpu.memory_space<vmem>>, vector<2x16x1xi32>
    %27 = vector.shape_cast %26 : vector<2x16x1xi32> to vector<32x1xi32>
    %c256_i32 = arith.constant 256 : i32
    %28 = arith.muli %arg1, %c256_i32 : i32
    %29 = tpu.iota {dimensions = array<i32: 1>} : vector<32x256xi32>
    %30 = vector.broadcast %28 : i32 to vector<32x256xi32>
    %31 = arith.addi %30, %29 : vector<32x256xi32>
    %c0_19 = arith.constant 0 : index
    %c0_20 = arith.constant 0 : index
    %32 = vector.load %arg15[%c0_19, %c0_20] : memref<32x1xf32, #tpu.memory_space<vmem>>, vector<32x1xf32>
    %33 = vector.broadcast %27 : vector<32x1xi32> to vector<32x256xi32>
    %34 = arith.cmpi eq, %31, %33 : vector<32x256xi32>
    %cst_21 = arith.constant 0.000000e+00 : f32
    %35 = vector.broadcast %cst_21 : f32 to vector<32x256xf32>
    %36 = arith.select %34, %9, %35 : vector<32x256xi1>, vector<32x256xf32>
    %cst_22 = arith.constant dense<0.000000e+00> : vector<32xf32>
    %37 = vector.multi_reduction <add>, %36, %cst_22 [1] : vector<32x256xf32> to vector<32xf32>
    %38 = vector.shape_cast %37 : vector<32xf32> to vector<32x1xf32>
    %39 = arith.addf %32, %38 : vector<32x1xf32>
    %c0_23 = arith.constant 0 : index
    %c0_24 = arith.constant 0 : index
    %40 = vector.load %arg15[%c0_23, %c0_24] : memref<32x1xf32, #tpu.memory_space<vmem>>, vector<32x1xf32>
    tpu.vector_store %arg15[%c0_23, %c0_24], %39 {strides = array<i32>} : memref<32x1xf32, #tpu.memory_space<vmem>>, vector<32x1xf32>,
    %c1_i32 = arith.constant 1 : i32
    %41 = arith.cmpi eq, %arg1, %c1_i32 : i32
    %42 = arith.extui %41 : i1 to i32
    %c0_i32_25 = arith.constant 0 : i32
    %43 = arith.cmpi ne, %42, %c0_i32_25 : i32
    scf.if %43 {
      %c0_26 = arith.constant 0 : index
      %c0_27 = arith.constant 0 : index
      %44 = vector.load %arg13[%c0_26, %c0_27] : memref<32x1xf32, #tpu.memory_space<vmem>>, vector<32x1xf32>
      %c0_28 = arith.constant 0 : index
      %c0_29 = arith.constant 0 : index
      %45 = vector.load %arg14[%c0_28, %c0_29] : memref<32x1xf32, #tpu.memory_space<vmem>>, vector<32x1xf32>
      %46 = math.log %45 : vector<32x1xf32>
      %47 = arith.addf %44, %46 : vector<32x1xf32>
      %c0_30 = arith.constant 0 : index
      %c0_31 = arith.constant 0 : index
      %48 = vector.load %arg15[%c0_30, %c0_31] : memref<32x1xf32, #tpu.memory_space<vmem>>, vector<32x1xf32>
      %49 = arith.subf %47, %48 : vector<32x1xf32>
      %50 = vector.shape_cast %49 : vector<32x1xf32> to vector<1x32x1xf32>
      %cst_32 = arith.constant dense<0.000000e+00> : vector<1xf32>
      %51 = vector.multi_reduction <add>, %50, %cst_32 [1, 2] : vector<1x32x1xf32> to vector<1xf32>
      %52 = vector.shape_cast %51 : vector<1xf32> to vector<1x1x1xf32>
      %53 = vector.extract %52[0, 0, 0] : f32 from vector<1x1x1xf32>
      %54 = vector.broadcast %53 : f32 to vector<1x1x128xf32>
      %c0_33 = arith.constant 0 : index
      %c0_34 = arith.constant 0 : index
      %c0_35 = arith.constant 0 : index
      %55 = vector.load %arg11[%c0_33, %c0_34, %c0_35] : memref<1x1x128xf32, #tpu.memory_space<vmem>>, vector<1x1x128xf32>
      tpu.vector_store %arg11[%c0_33, %c0_34, %c0_35], %54 {strides = array<i32>} : memref<1x1x128xf32, #tpu.memory_space<vmem>>, vector<1x1x128xf32>,
    } else {
    }
    return
  }
  func.func @transform_0(%arg0: i32, %arg1: i32) -> (i32, i32, i32) {
    %c0_i32 = arith.constant 0 : i32
    %c0_i32_0 = arith.constant 0 : i32
    %c0_i32_1 = arith.constant 0 : i32
    return %arg0, %c0_i32, %c0_i32_0 : i32, i32, i32
  }
  func.func @transform_1(%arg0: i32, %arg1: i32) -> (i32, i32, i32) {
    %c0_i32 = arith.constant 0 : i32
    %c0_i32_0 = arith.constant 0 : i32
    %c0_i32_1 = arith.constant 0 : i32
    return %arg0, %c0_i32, %c0_i32_0 : i32, i32, i32
  }
  func.func @transform_2(%arg0: i32, %arg1: i32) -> (i32, i32, i32) {
    %c0_i32 = arith.constant 0 : i32
    %c0_i32_0 = arith.constant 0 : i32
    %c0_i32_1 = arith.constant 0 : i32
    return %arg0, %c0_i32, %c0_i32_0 : i32, i32, i32
  }
  func.func @transform_3(%arg0: i32, %arg1: i32) -> (i32, i32) {
    %c0_i32 = arith.constant 0 : i32
    %c0_i32_0 = arith.constant 0 : i32
    %c0_i32_1 = arith.constant 0 : i32
    return %c0_i32, %c0_i32_0 : i32, i32
  }
  func.func @transform_4(%arg0: i32, %arg1: i32) -> (i32, i32) {
    %c0_i32 = arith.constant 0 : i32
    %c0_i32_0 = arith.constant 0 : i32
    %c0_i32_1 = arith.constant 0 : i32
    return %c0_i32, %c0_i32_0 : i32, i32
  }
  func.func @transform_5(%arg0: i32, %arg1: i32) -> (i32, i32) {
    %c0_i32 = arith.constant 0 : i32
    %c0_i32_0 = arith.constant 0 : i32
    %c0_i32_1 = arith.constant 0 : i32
    return %c0_i32, %c0_i32_0 : i32, i32
  }
  func.func @transform_6(%arg0: i32, %arg1: i32) -> (i32, i32) {
    %c0_i32 = arith.constant 0 : i32
    %c0_i32_0 = arith.constant 0 : i32
    %c0_i32_1 = arith.constant 0 : i32
    return %c0_i32, %c0_i32_0 : i32, i32
  }
  func.func @transform_7(%arg0: i32, %arg1: i32) -> (i32, i32) {
    %c0_i32 = arith.constant 0 : i32
    %c0_i32_0 = arith.constant 0 : i32
    return %c0_i32, %arg1 : i32, i32
  }
  func.func @transform_8(%arg0: i32, %arg1: i32) -> (i32, i32) {
    %c0_i32 = arith.constant 0 : i32
    %c0_i32_0 = arith.constant 0 : i32
    return %c0_i32, %arg1 : i32, i32
  }
  func.func @transform_9(%arg0: i32, %arg1: i32) -> (i32, i32, i32) {
    %c0_i32 = arith.constant 0 : i32
    %c0_i32_0 = arith.constant 0 : i32
    %c0_i32_1 = arith.constant 0 : i32
    return %arg0, %c0_i32, %c0_i32_0 : i32, i32, i32
  }
}

</mosaic_0001>

<llo_original>
// kernel: text2sql_loss.1
$region0: #{text2sql_loss.1}
  #allocation0 [shape = 'u32[]', space=smem, size = 0x4, offset = 0x4, fixed_abs, tag = 'smem constant byte address 0x4 - core index']
  #allocation1 [shape = 'u32[144,128]{1,0:T(1,128)}', space=vmem, size = 0x12000, scoped, tag = 'internal scratch']
  #allocation2 [shape = 'f32[32,128]{1,0:T(8,128)}', space=vmem, size = 0x4000, scoped, tag = 'scratch operand']
  #allocation3 [shape = 'f32[32,1]{1,0:T(8,128)}', space=vmem, size = 0x4000, scoped, tag = 'scratch operand']
  #allocation4 [shape = 'f32[32,1]{1,0:T(8,128)}', space=vmem, size = 0x4000, scoped, tag = 'scratch operand']
  #allocation5 [shape = 'f32[32,1]{1,0:T(8,128)}', space=vmem, size = 0x4000, scoped, tag = 'scratch operand']
  %s0 = inlined_call_operand.vmem [shape: bf16[4,16,128], index: 0, kind: input, shape index: {}]
  %s1 = inlined_call_operand.vmem [shape: bf16[4,16,128], index: 1, kind: input, shape index: {}]
  %s2 = inlined_call_operand.vmem [shape: s32[4,16,1], index: 2, kind: input, shape index: {}]
  %s3 = inlined_call_operand.vmem [shape: bf16[128,384], index: 3, kind: input, shape index: {}]
  %s4 = inlined_call_operand.vmem [shape: bf16[128,128], index: 4, kind: input, shape index: {}]
  %s5 = inlined_call_operand.vmem [shape: f32[1,128], index: 5, kind: input, shape index: {}]
  %s6 = inlined_call_operand.vmem [shape: bf16[128,128], index: 6, kind: input, shape index: {}]
  %s7 = inlined_call_operand.vmem [shape: bf16[128,512], index: 7, kind: input, shape index: {}]
  %s8 = inlined_call_operand.vmem [shape: f32[1,512], index: 8, kind: input, shape index: {}]
  %s9 = inlined_call_operand.vmem [shape: f32[2,1,128], index: 9, kind: output, shape index: {}]
  %s10 = sld [smem:[#allocation0]]
  $region115: #{text2sql_loss.1} parent=0
    _
  %s12 = ssub.s32 1, %s10
  %s13 = scalar_select 0, %s12, %s10
  $region1: #{text2sql_loss.1} parent=0
    #allocation6 [shape = 'u8[131072]{0}', space=vmem, size = 0x20000, scoped, tag = 'input window, operand 7']
    loop: start=0, step=1, limit=6
    $region2: #{text2sql_loss.1} parent=1 // loop_pre_header
      _
    $region3: #{text2sql_loss.1} parent=1 // loop_header
      %s15 = sphi 0, %s19
      %p16 = scmp.ge.s32.totalorder %s15, 6
      %s22 = sphi 0, %s34
      %s23 = sphi 0, %s30
      %s24 = sphi 0, %s22
      %s25 = sphi 0, %s23
      %s26 = sphi 0, %s24
      %s27 = sphi 0, %s25
      %s37 = sphi 0, %s39
      %s40 = sphi 0, %s37
      %s41 = sphi 0, %s40
      %s57 = sphi 0, %s41
      %s63 = sphi 0, %s65
      %s66 = sphi 0, %s63
      %s67 = sphi 0, %s66
      %s83 = sphi 0, %s67
      %s89 = sphi 0, %s91
      %s92 = sphi 0, %s89
      %s93 = sphi 0, %s92
      %s109 = sphi 0, %s93
      %s113 = sphi 0, %s113
      %s115 = sphi 0, %s113
      %s116 = sphi 0, %s115
      %s130 = sphi 0, %s116
      %s134 = sphi 0, %s134
      %s136 = sphi 0, %s134
      %s137 = sphi 0, %s136
      %s151 = sphi 0, %s137
      %s155 = sphi 0, %s155
      %s157 = sphi 0, %s155
      %s158 = sphi 0, %s157
      %s172 = sphi 0, %s158
      %s176 = sphi 0, %s176
      %s178 = sphi 0, %s176
      %s179 = sphi 0, %s178
      %s193 = sphi 0, %s179
      %s199 = sphi 0, %s201
      %s202 = sphi 0, %s199
      %s203 = sphi 0, %s202
      %s219 = sphi 0, %s203
      %s225 = sphi 0, %s227
      %s228 = sphi 0, %s225
      %s229 = sphi 0, %s228
      %s245 = sphi 0, %s229
      %s251 = sphi 0, %s253
      %s254 = sphi 0, %s251
      %s255 = sphi 0, %s254
      %s271 = sphi 0, %s255
    $region4: #{text2sql_loss.1} parent=1 // loop_header_branch
      %18 = sbr.rel (%p16) target = $region8
    $region5: #{text2sql_loss.1} parent=1 // loop_body
      %s20 = ssub.s32 %s15, 1
      %s21 = ssub.s32 %s15, 2
      %s28 = sadd.s32 1, %s23
      %p29 = scmp.ge.s32.totalorder %s28, 2
      %s30 = scalar_select %p29, 0, %s28
      %s31 = sadd.s32 1, %s22
      %s32 = scalar_select %p29, %s31, %s22
      %p33 = scmp.ge.s32.totalorder %s32, 2
      %s34 = scalar_select %p33, 0, %s32
      %s35 = ssub.s32 %s22, %s34
      %p36 = scmp.eq.s32.totalorder %s35, 0
      %s38 = sadd.s32 %s37, 1
      %s39 = scalar_select %p36, %s37, %s38
      %p42 = pneg %p36
      %p43 = scmp.eq.s32.totalorder %s15, 3
      %p44 = por %p42, %p43
      %p45 = scmp.ne.s32.totalorder %s37, %s40
      %p46 = scmp.eq.s32.totalorder %s15, 0
      %p47 = por %p45, %p46
      %p48 = scmp.ne.s32.totalorder %s37, %s40
      %p49 = scmp.eq.s32.totalorder %s20, 3
      %p50 = por %p48, %p49
      %p51 = scmp.ne.s32.totalorder %s40, %s41
      %p52 = scmp.eq.s32.totalorder %s20, 0
      %p53 = por %p51, %p52
      %p54 = scmp.ne.s32.totalorder %s40, %s41
      %p55 = scmp.eq.s32.totalorder %s21, 3
      %p56 = por %p54, %p55
      %p58 = scmp.ne.s32.totalorder %s41, %s57
      %p59 = scmp.eq.s32.totalorder %s21, 0
      %p60 = por %p58, %p59
      %s61 = ssub.s32 %s22, %s34
      %p62 = scmp.eq.s32.totalorder %s61, 0
      %s64 = sadd.s32 %s63, 1
      %s65 = scalar_select %p62, %s63, %s64
      %p68 = pneg %p62
      %p69 = scmp.eq.s32.totalorder %s15, 3
      %p70 = por %p68, %p69
      %p71 = scmp.ne.s32.totalorder %s63, %s66
      %p72 = scmp.eq.s32.totalorder %s15, 0
      %p73 = por %p71, %p72
      %p74 = scmp.ne.s32.totalorder %s63, %s66
      %p75 = scmp.eq.s32.totalorder %s20, 3
      %p76 = por %p74, %p75
      %p77 = scmp.ne.s32.totalorder %s66, %s67
      %p78 = scmp.eq.s32.totalorder %s20, 0
      %p79 = por %p77, %p78
      %p80 = scmp.ne.s32.totalorder %s66, %s67
      %p81 = scmp.eq.s32.totalorder %s21, 3
      %p82 = por %p80, %p81
      %p84 = scmp.ne.s32.totalorder %s67, %s83
      %p85 = scmp.eq.s32.totalorder %s21, 0
      %p86 = por %p84, %p85
      %s87 = ssub.s32 %s22, %s34
      %p88 = scmp.eq.s32.totalorder %s87, 0
      %s90 = sadd.s32 %s89, 1
      %s91 = scalar_select %p88, %s89, %s90
      %p94 = pneg %p88
      %p95 = scmp.eq.s32.totalorder %s15, 3
      %p96 = por %p94, %p95
      %p97 = scmp.ne.s32.totalorder %s89, %s92
      %p98 = scmp.eq.s32.totalorder %s15, 0
      %p99 = por %p97, %p98
      %p100 = scmp.ne.s32.totalorder %s89, %s92
      %p101 = scmp.eq.s32.totalorder %s20, 3
      %p102 = por %p100, %p101
      %p103 = scmp.ne.s32.totalorder %s92, %s93
      %p104 = scmp.eq.s32.totalorder %s20, 0
      %p105 = por %p103, %p104
      %p106 = scmp.ne.s32.totalorder %s92, %s93
      %p107 = scmp.eq.s32.totalorder %s21, 3
      %p108 = por %p106, %p107
      %p110 = scmp.ne.s32.totalorder %s93, %s109
      %p111 = scmp.eq.s32.totalorder %s21, 0
      %p112 = por %p110, %p111
      %s114 = sadd.s32 %s113, 1
      %p117 = scmp.eq.s32.totalorder %s15, 3
      %p118 = scmp.ne.s32.totalorder %s113, %s115
      %p119 = scmp.eq.s32.totalorder %s15, 0
      %p120 = por %p118, %p119
      %p121 = scmp.ne.s32.totalorder %s113, %s115
      %p122 = scmp.eq.s32.totalorder %s20, 3
      %p123 = por %p121, %p122
      %p124 = scmp.ne.s32.totalorder %s115, %s116
      %p125 = scmp.eq.s32.totalorder %s20, 0
      %p126 = por %p124, %p125
      %p127 = scmp.ne.s32.totalorder %s115, %s116
      %p128 = scmp.eq.s32.totalorder %s21, 3
      %p129 = por %p127, %p128
      %p131 = scmp.ne.s32.totalorder %s116, %s130
      %p132 = scmp.eq.s32.totalorder %s21, 0
      %p133 = por %p131, %p132
      %s135 = sadd.s32 %s134, 1
      %p138 = scmp.eq.s32.totalorder %s15, 3
      %p139 = scmp.ne.s32.totalorder %s134, %s136
      %p140 = scmp.eq.s32.totalorder %s15, 0
      %p141 = por %p139, %p140
      %p142 = scmp.ne.s32.totalorder %s134, %s136
      %p143 = scmp.eq.s32.totalorder %s20, 3
      %p144 = por %p142, %p143
      %p145 = scmp.ne.s32.totalorder %s136, %s137
      %p146 = scmp.eq.s32.totalorder %s20, 0
      %p147 = por %p145, %p146
      %p148 = scmp.ne.s32.totalorder %s136, %s137
      %p149 = scmp.eq.s32.totalorder %s21, 3
      %p150 = por %p148, %p149
      %p152 = scmp.ne.s32.totalorder %s137, %s151
      %p153 = scmp.eq.s32.totalorder %s21, 0
      %p154 = por %p152, %p153
      %s156 = sadd.s32 %s155, 1
      %p159 = scmp.eq.s32.totalorder %s15, 3
      %p160 = scmp.ne.s32.totalorder %s155, %s157
      %p161 = scmp.eq.s32.totalorder %s15, 0
      %p162 = por %p160, %p161
      %p163 = scmp.ne.s32.totalorder %s155, %s157
      %p164 = scmp.eq.s32.totalorder %s20, 3
      %p165 = por %p163, %p164
      %p166 = scmp.ne.s32.totalorder %s157, %s158
      %p167 = scmp.eq.s32.totalorder %s20, 0
      %p168 = por %p166, %p167
      %p169 = scmp.ne.s32.totalorder %s157, %s158
      %p170 = scmp.eq.s32.totalorder %s21, 3
      %p171 = por %p169, %p170
      %p173 = scmp.ne.s32.totalorder %s158, %s172
      %p174 = scmp.eq.s32.totalorder %s21, 0
      %p175 = por %p173, %p174
      %s177 = sadd.s32 %s176, 1
      %p180 = scmp.eq.s32.totalorder %s15, 3
      %p181 = scmp.ne.s32.totalorder %s176, %s178
      %p182 = scmp.eq.s32.totalorder %s15, 0
      %p183 = por %p181, %p182
      %p184 = scmp.ne.s32.totalorder %s176, %s178
      %p185 = scmp.eq.s32.totalorder %s20, 3
      %p186 = por %p184, %p185
      %p187 = scmp.ne.s32.totalorder %s178, %s179
      %p188 = scmp.eq.s32.totalorder %s20, 0
      %p189 = por %p187, %p188
      %p190 = scmp.ne.s32.totalorder %s178, %s179
      %p191 = scmp.eq.s32.totalorder %s21, 3
      %p192 = por %p190, %p191
      %p194 = scmp.ne.s32.totalorder %s179, %s193
      %p195 = scmp.eq.s32.totalorder %s21, 0
      %p196 = por %p194, %p195
      %s197 = ssub.s32 %s23, %s30
      %p198 = scmp.eq.s32.totalorder %s197, 0
      %s200 = sadd.s32 %s199, 1
      %s201 = scalar_select %p198, %s199, %s200
      %p204 = pneg %p198
      %p205 = scmp.eq.s32.totalorder %s15, 3
      %p206 = por %p204, %p205
      %p207 = scmp.ne.s32.totalorder %s199, %s202
      %p208 = scmp.eq.s32.totalorder %s15, 0
      %p209 = por %p207, %p208
      %p210 = scmp.ne.s32.totalorder %s199, %s202
      %p211 = scmp.eq.s32.totalorder %s20, 3
      %p212 = por %p210, %p211
      %p213 = scmp.ne.s32.totalorder %s202, %s203
      %p214 = scmp.eq.s32.totalorder %s20, 0
      %p215 = por %p213, %p214
      %p216 = scmp.ne.s32.totalorder %s202, %s203
      %p217 = scmp.eq.s32.totalorder %s21, 3
      %p218 = por %p216, %p217
      %p220 = scmp.ne.s32.totalorder %s203, %s219
      %p221 = scmp.eq.s32.totalorder %s21, 0
      %p222 = por %p220, %p221
      %s223 = ssub.s32 %s23, %s30
      %p224 = scmp.eq.s32.totalorder %s223, 0
      %s226 = sadd.s32 %s225, 1
      %s227 = scalar_select %p224, %s225, %s226
      %p230 = pneg %p224
      %p231 = scmp.eq.s32.totalorder %s15, 3
      %p232 = por %p230, %p231
      %p233 = scmp.ne.s32.totalorder %s225, %s228
      %p234 = scmp.eq.s32.totalorder %s15, 0
      %p235 = por %p233, %p234
      %p236 = scmp.ne.s32.totalorder %s225, %s228
      %p237 = scmp.eq.s32.totalorder %s20, 3
      %p238 = por %p236, %p237
      %p239 = scmp.ne.s32.totalorder %s228, %s229
      %p240 = scmp.eq.s32.totalorder %s20, 0
      %p241 = por %p239, %p240
      %p242 = scmp.ne.s32.totalorder %s228, %s229
      %p243 = scmp.eq.s32.totalorder %s21, 3
      %p244 = por %p242, %p243
      %p246 = scmp.ne.s32.totalorder %s229, %s245
      %p247 = scmp.eq.s32.totalorder %s21, 0
      %p248 = por %p246, %p247
      %s249 = ssub.s32 %s22, %s34
      %p250 = scmp.eq.s32.totalorder %s249, 0
      %s252 = sadd.s32 %s251, 1
      %s253 = scalar_select %p250, %s251, %s252
      %p256 = pneg %p250
      %p257 = scmp.eq.s32.totalorder %s15, 3
      %p258 = por %p256, %p257
      %p259 = scmp.ne.s32.totalorder %s251, %s254
      %p260 = scmp.eq.s32.totalorder %s15, 0
      %p261 = por %p259, %p260
      %p262 = scmp.ne.s32.totalorder %s251, %s254
      %p263 = scmp.eq.s32.totalorder %s20, 3
      %p264 = por %p262, %p263
      %p265 = scmp.ne.s32.totalorder %s254, %s255
      %p266 = scmp.eq.s32.totalorder %s20, 0
      %p267 = por %p265, %p266
      %p268 = scmp.ne.s32.totalorder %s254, %s255
      %p269 = scmp.eq.s32.totalorder %s21, 3
      %p270 = por %p268, %p269
      %p272 = scmp.ne.s32.totalorder %s255, %s271
      %p273 = scmp.eq.s32.totalorder %s21, 0
      %p274 = por %p272, %p273
      %p275 = scmp.le.s32.totalorder 1, %s15
      %p276 = scmp.lt.s32.totalorder %s15, 5
      %p277 = pnand %p275, %p276
      %p278 = pneg %p277
      // Predicated region
      $region9: #{text2sql_loss.1} parent=5 // pred_check
        _
      $region10: #{text2sql_loss.1} parent=5 // pred_check_branch
        %280 = sbr.rel (%p277) target = $region12
      $region11: #{text2sql_loss.1} parent=5 // pred_region
        %s281 = ssub.s32 %s15, 1
        // Predicated region
        $region13: #{text2sql_loss.1} parent=11 // pred_check
          %p282 = pneg %p126
        $region14: #{text2sql_loss.1} parent=11 // pred_check_branch
          %284 = sbr.rel (%p282) target = $region16
        $region15: #{text2sql_loss.1} parent=11 // pred_region
          _
        $region16: #{text2sql_loss.1} parent=11 // pred_fallthru
          _
        // Predicated region
        $region17: #{text2sql_loss.1} parent=11 // pred_check
          %p285 = pneg %p147
        $region18: #{text2sql_loss.1} parent=11 // pred_check_branch
          %287 = sbr.rel (%p285) target = $region20
        $region19: #{text2sql_loss.1} parent=11 // pred_region
          _
        $region20: #{text2sql_loss.1} parent=11 // pred_fallthru
          _
        // Predicated region
        $region21: #{text2sql_loss.1} parent=11 // pred_check
          %p288 = pneg %p168
        $region22: #{text2sql_loss.1} parent=11 // pred_check_branch
          %290 = sbr.rel (%p288) target = $region24
        $region23: #{text2sql_loss.1} parent=11 // pred_region
          _
        $region24: #{text2sql_loss.1} parent=11 // pred_fallthru
          _
        // Predicated region
        $region25: #{text2sql_loss.1} parent=11 // pred_check
          %p291 = pneg %p189
        $region26: #{text2sql_loss.1} parent=11 // pred_check_branch
          %293 = sbr.rel (%p291) target = $region28
        $region27: #{text2sql_loss.1} parent=11 // pred_region
          _
        $region28: #{text2sql_loss.1} parent=11 // pred_fallthru
          _
      $region12: #{text2sql_loss.1} parent=5 // pred_fallthru
        _
      %p294 = scmp.lt.s32.totalorder %s15, 4
      // Predicated region
      $region29: #{text2sql_loss.1} parent=5 // pred_check
        %p295 = pneg %p294
      $region30: #{text2sql_loss.1} parent=5 // pred_check_branch
        %297 = sbr.rel (%p295) target = $region32
      $region31: #{text2sql_loss.1} parent=5 // pred_region
        // Predicated region
        $region33: #{text2sql_loss.1} parent=31 // pred_check
          %p298 = pneg %p47
        $region34: #{text2sql_loss.1} parent=31 // pred_check_branch
          %300 = sbr.rel (%p298) target = $region36
        $region35: #{text2sql_loss.1} parent=31 // pred_region
          %s301 = smul.u32 2, %s22
          %p302 = scmp.lt.s32.totalorder %s301, 3
          %s303 = scalar_select %p302, %s301, 3
          %s304 = smul.addr %s303, 2
          %s305 = smul.addr %s304, 4
          %s306 = scalar_lea.vmem %s0, %s305
          %s307 = smul.u32 2, %s22
        $region36: #{text2sql_loss.1} parent=31 // pred_fallthru
          _
        // Predicated region
        $region37: #{text2sql_loss.1} parent=31 // pred_check
          %p308 = pneg %p73
        $region38: #{text2sql_loss.1} parent=31 // pred_check_branch
          %310 = sbr.rel (%p308) target = $region40
        $region39: #{text2sql_loss.1} parent=31 // pred_region
          %s311 = smul.u32 2, %s22
          %p312 = scmp.lt.s32.totalorder %s311, 3
          %s313 = scalar_select %p312, %s311, 3
          %s314 = smul.addr %s313, 2
          %s315 = smul.addr %s314, 4
          %s316 = scalar_lea.vmem %s1, %s315
          %s317 = smul.u32 2, %s22
        $region40: #{text2sql_loss.1} parent=31 // pred_fallthru
          _
        // Predicated region
        $region41: #{text2sql_loss.1} parent=31 // pred_check
          %p318 = pneg %p99
        $region42: #{text2sql_loss.1} parent=31 // pred_check_branch
          %320 = sbr.rel (%p318) target = $region44
        $region43: #{text2sql_loss.1} parent=31 // pred_region
          %s321 = smul.u32 2, %s22
          %p322 = scmp.lt.s32.totalorder %s321, 3
          %s323 = scalar_select %p322, %s321, 3
          %s324 = smul.addr %s323, 2
          %s325 = smul.addr %s324, 8
          %s326 = scalar_lea.vmem %s2, %s325
          %s327 = smul.u32 2, %s22
        $region44: #{text2sql_loss.1} parent=31 // pred_fallthru
          _
        // Predicated region
        $region45: #{text2sql_loss.1} parent=31 // pred_check
          %p328 = pneg %p209
        $region46: #{text2sql_loss.1} parent=31 // pred_check_branch
          %330 = sbr.rel (%p328) target = $region48
        $region47: #{text2sql_loss.1} parent=31 // pred_region
          %s331 = sand.u32 %s199, 1
          %s332 = sand.u32 %s199, 1
          %s333 = smul.addr %s332, 128
          %s334 = scalar_lea.vmem [#allocation6], %s333
          %s335 = smul.u32 2, %s23
          %s336 = smul.addr %s335, 4
          %s337 = scalar_lea.vmem %s7, %s336
          // Predicated region
          $region49: #{text2sql_loss.1} parent=47 // pred_check
            _
          $region50: #{text2sql_loss.1} parent=47 // pred_check_branch
            %339 = sbr.rel (0) target = $region52
          $region51: #{text2sql_loss.1} parent=47 // pred_region
            // Predicated region
            $region53: #{text2sql_loss.1} parent=51 // pred_check
              _
            $region54: #{text2sql_loss.1} parent=51 // pred_check_branch
              %341 = sbr.rel (0) target = $region56
            $region55: #{text2sql_loss.1} parent=51 // pred_region
              // Predicated region
              $region68: #{text2sql_loss.1} parent=55 // pred_check
                _
              $region69: #{text2sql_loss.1} parent=55 // pred_check_branch
                %386 = sbr.rel (0) target = $region71
              $region70: #{text2sql_loss.1} parent=55 // pred_region
                loop: start=0, step=1, limit=1
                $region72: #{text2sql_loss.1} parent=70 // loop_pre_header
                  _
                $region73: #{text2sql_loss.1} parent=70 // loop_header
                  %s388 = sphi 0, %s392
                  %p389 = scmp.ge.s32.totalorder %s388, 1
                  %s393 = sphi %s337, %s337
                  %s394 = sphi %s334, %s334
                $region74: #{text2sql_loss.1} parent=70 // loop_header_branch
                  %391 = sbr.rel (%p389) target = $region78
                $region75: #{text2sql_loss.1} parent=70 // loop_body
                  %v395 = vld [vmem:[%s393] sm:$0xff]
                  %396 = vst [vmem:[%s394] sm:$0xff] %v395
                  %v397 = vld [vmem:[%s393 + $0x10] sm:$0xff]
                  %398 = vst [vmem:[%s394 + $0x8] sm:$0xff] %v397
                  %v399 = vld [vmem:[%s393 + $0x20] sm:$0xff]
                  %400 = vst [vmem:[%s394 + $0x10] sm:$0xff] %v399
                  %v401 = vld [vmem:[%s393 + $0x30] sm:$0xff]
                  %402 = vst [vmem:[%s394 + $0x18] sm:$0xff] %v401
                  %v403 = vld [vmem:[%s393 + $0x40] sm:$0xff]
                  %404 = vst [vmem:[%s394 + $0x20] sm:$0xff] %v403
                  %v405 = vld [vmem:[%s393 + $0x50] sm:$0xff]
                  %406 = vst [vmem:[%s394 + $0x28] sm:$0xff] %v405
                  %v407 = vld [vmem:[%s393 + $0x60] sm:$0xff]
                  %408 = vst [vmem:[%s394 + $0x30] sm:$0xff] %v407
                  %v409 = vld [vmem:[%s393 + $0x70] sm:$0xff]
                  %410 = vst [vmem:[%s394 + $0x38] sm:$0xff] %v409
                  %v411 = vld [vmem:[%s393 + $0x80] sm:$0xff]
                  %412 = vst [vmem:[%s394 + $0x40] sm:$0xff] %v411
                  %v413 = vld [vmem:[%s393 + $0x90] sm:$0xff]
                  %414 = vst [vmem:[%s394 + $0x48] sm:$0xff] %v413
                  %v415 = vld [vmem:[%s393 + $0xa0] sm:$0xff]
                  %416 = vst [vmem:[%s394 + $0x50] sm:$0xff] %v415
                  %v417 = vld [vmem:[%s393 + $0xb0] sm:$0xff]
                  %418 = vst [vmem:[%s394 + $0x58] sm:$0xff] %v417
                  %v419 = vld [vmem:[%s393 + $0xc0] sm:$0xff]
                  %420 = vst [vmem:[%s394 + $0x60] sm:$0xff] %v419
                  %v421 = vld [vmem:[%s393 + $0xd0] sm:$0xff]
                  %422 = vst [vmem:[%s394 + $0x68] sm:$0xff] %v421
                  %v423 = vld [vmem:[%s393 + $0xe0] sm:$0xff]
                  %424 = vst [vmem:[%s394 + $0x70] sm:$0xff] %v423
                  %v425 = vld [vmem:[%s393 + $0xf0] sm:$0xff]
                  %426 = vst [vmem:[%s394 + $0x78] sm:$0xff] %v425
                $region76: #{text2sql_loss.1} parent=70 // loop_footer
                  %s392 = sadd.s32 1, %s388
                $region77: #{text2sql_loss.1} parent=70 // loop_footer_branch
                  %387 = sbr.rel target = $region73
                $region78: #{text2sql_loss.1} parent=70 // loop_exit
                  _
              $region71: #{text2sql_loss.1} parent=55 // pred_fallthru
                _
              // Predicated region
              $region79: #{text2sql_loss.1} parent=55 // pred_check
                _
              $region80: #{text2sql_loss.1} parent=55 // pred_check_branch
                %428 = sbr.rel target = $region82
              $region81: #{text2sql_loss.1} parent=55 // pred_region
                _
              $region82: #{text2sql_loss.1} parent=55 // pred_fallthru
                _
            $region56: #{text2sql_loss.1} parent=51 // pred_fallthru
              _
            // Predicated region
            $region57: #{text2sql_loss.1} parent=51 // pred_check
              _
            $region58: #{text2sql_loss.1} parent=51 // pred_check_branch
              %343 = sbr.rel target = $region60
            $region59: #{text2sql_loss.1} parent=51 // pred_region
              loop: start=0, step=1, limit=1
              $region61: #{text2sql_loss.1} parent=59 // loop_pre_header
                _
              $region62: #{text2sql_loss.1} parent=59 // loop_header
                %s346 = sphi 0, %s350
                %p347 = scmp.ge.s32.totalorder %s346, 1
                %s351 = sphi %s337, %s337
                %s352 = sphi %s334, %s334
              $region63: #{text2sql_loss.1} parent=59 // loop_header_branch
                %349 = sbr.rel (%p347) target = $region67
              $region64: #{text2sql_loss.1} parent=59 // loop_body
                %v353 = vld [vmem:[%s351] sm:$0xff]
                %354 = vst [vmem:[%s352] sm:$0xff] %v353
                %v355 = vld [vmem:[%s351 + $0x10] sm:$0xff]
                %356 = vst [vmem:[%s352 + $0x8] sm:$0xff] %v355
                %v357 = vld [vmem:[%s351 + $0x20] sm:$0xff]
                %358 = vst [vmem:[%s352 + $0x10] sm:$0xff] %v357
                %v359 = vld [vmem:[%s351 + $0x30] sm:$0xff]
                %360 = vst [vmem:[%s352 + $0x18] sm:$0xff] %v359
                %v361 = vld [vmem:[%s351 + $0x40] sm:$0xff]
                %362 = vst [vmem:[%s352 + $0x20] sm:$0xff] %v361
                %v363 = vld [vmem:[%s351 + $0x50] sm:$0xff]
                %364 = vst [vmem:[%s352 + $0x28] sm:$0xff] %v363
                %v365 = vld [vmem:[%s351 + $0x60] sm:$0xff]
                %366 = vst [vmem:[%s352 + $0x30] sm:$0xff] %v365
                %v367 = vld [vmem:[%s351 + $0x70] sm:$0xff]
                %368 = vst [vmem:[%s352 + $0x38] sm:$0xff] %v367
                %v369 = vld [vmem:[%s351 + $0x80] sm:$0xff]
                %370 = vst [vmem:[%s352 + $0x40] sm:$0xff] %v369
                %v371 = vld [vmem:[%s351 + $0x90] sm:$0xff]
                %372 = vst [vmem:[%s352 + $0x48] sm:$0xff] %v371
                %v373 = vld [vmem:[%s351 + $0xa0] sm:$0xff]
                %374 = vst [vmem:[%s352 + $0x50] sm:$0xff] %v373
                %v375 = vld [vmem:[%s351 + $0xb0] sm:$0xff]
                %376 = vst [vmem:[%s352 + $0x58] sm:$0xff] %v375
                %v377 = vld [vmem:[%s351 + $0xc0] sm:$0xff]
                %378 = vst [vmem:[%s352 + $0x60] sm:$0xff] %v377
                %v379 = vld [vmem:[%s351 + $0xd0] sm:$0xff]
                %380 = vst [vmem:[%s352 + $0x68] sm:$0xff] %v379
                %v381 = vld [vmem:[%s351 + $0xe0] sm:$0xff]
                %382 = vst [vmem:[%s352 + $0x70] sm:$0xff] %v381
                %v383 = vld [vmem:[%s351 + $0xf0] sm:$0xff]
                %384 = vst [vmem:[%s352 + $0x78] sm:$0xff] %v383
              $region65: #{text2sql_loss.1} parent=59 // loop_footer
                %s350 = sadd.s32 1, %s346
              $region66: #{text2sql_loss.1} parent=59 // loop_footer_branch
                %345 = sbr.rel target = $region62
              $region67: #{text2sql_loss.1} parent=59 // loop_exit
                _
            $region60: #{text2sql_loss.1} parent=51 // pred_fallthru
              _
          $region52: #{text2sql_loss.1} parent=47 // pred_fallthru
            _
          %429 = vnop
        $region48: #{text2sql_loss.1} parent=31 // pred_fallthru
          _
        // Predicated region
        $region83: #{text2sql_loss.1} parent=31 // pred_check
          %p430 = pneg %p235
        $region84: #{text2sql_loss.1} parent=31 // pred_check_branch
          %432 = sbr.rel (%p430) target = $region86
        $region85: #{text2sql_loss.1} parent=31 // pred_region
          %s433 = smul.u32 2, %s23
          %p434 = scmp.lt.s32.totalorder %s433, 3
          %s435 = scalar_select %p434, %s433, 3
          %s436 = scalar_lea.vmem %s8, %s435
          %s437 = smul.u32 2, %s23
        $region86: #{text2sql_loss.1} parent=31 // pred_fallthru
          _
      $region32: #{text2sql_loss.1} parent=5 // pred_fallthru
        _
      %p438 = scmp.le.s32.totalorder 1, %s15
      %p439 = scmp.lt.s32.totalorder %s15, 5
      %p440 = pnand %p438, %p439
      %p441 = pneg %p440
      // Predicated region
      $region87: #{text2sql_loss.1} parent=5 // pred_check
        _
      $region88: #{text2sql_loss.1} parent=5 // pred_check_branch
        %443 = sbr.rel (%p440) target = $region90
      $region89: #{text2sql_loss.1} parent=5 // pred_region
        %s444 = ssub.s32 %s15, 1
        %s445 = sand.u32 %s202, 1
        %s446 = sand.u32 %s202, 1
        %s447 = smul.addr %s446, 128
        %s448 = scalar_lea.vmem [#allocation6], %s447
        // Predicated region
        $region91: #{text2sql_loss.1} parent=89 // pred_check
          %p449 = pneg %p215
        $region92: #{text2sql_loss.1} parent=89 // pred_check_branch
          %451 = sbr.rel (%p449) target = $region94
        $region93: #{text2sql_loss.1} parent=89 // pred_region
          _
        $region94: #{text2sql_loss.1} parent=89 // pred_fallthru
          _
        %s452 = smul.u32 2, %s24
        %p453 = scmp.lt.s32.totalorder %s452, 3
        %s454 = scalar_select %p453, %s452, 3
        %s455 = smul.addr %s454, 2
        %s456 = smul.addr %s455, 4
        %s457 = scalar_lea.vmem %s0, %s456
        %p458 = pneg %p53
        %p459 = pneg %p50
        %s460 = smul.u32 2, %s24
        %p461 = scmp.lt.s32.totalorder %s460, 3
        %s462 = scalar_select %p461, %s460, 3
        %s463 = smul.addr %s462, 2
        %s464 = smul.addr %s463, 4
        %s465 = scalar_lea.vmem %s1, %s464
        %p466 = pneg %p79
        %p467 = pneg %p76
        %s468 = smul.u32 2, %s24
        %p469 = scmp.lt.s32.totalorder %s468, 3
        %s470 = scalar_select %p469, %s468, 3
        %s471 = smul.addr %s470, 2
        %s472 = smul.addr %s471, 8
        %s473 = scalar_lea.vmem %s2, %s472
        %p474 = pneg %p105
        %p475 = pneg %p102
        %p476 = pneg %p126
        %p477 = pneg %p123
        %p478 = pneg %p147
        %p479 = pneg %p144
        %p480 = pneg %p168
        %p481 = pneg %p165
        %p482 = pneg %p189
        %p483 = pneg %p186
        %s484 = sand.u32 %s202, 1
        %s485 = sand.u32 %s202, 1
        %s486 = smul.addr %s485, 128
        %s487 = scalar_lea.vmem [#allocation6], %s486
        %p488 = pneg %p215
        %p489 = pneg %p212
        %s490 = smul.u32 2, %s25
        %p491 = scmp.lt.s32.totalorder %s490, 3
        %s492 = scalar_select %p491, %s490, 3
        %s493 = scalar_lea.vmem %s8, %s492
        %p494 = pneg %p241
        %p495 = pneg %p238
        %p496 = pneg %p267
        %p497 = pneg %p264
        %p498 = scmp.lt.s32.totalorder %s24, 1
        %s499 = scalar_select %p498, %s24, 1
        %s500 = scalar_lea.vmem %s9, %s499
        %s501 = smul.u32 2, %s24
        %p502 = scmp.lt.s32.totalorder %s501, 3
        %s503 = scalar_select %p502, %s501, 3
        %s504 = smul.addr %s503, 2
        %s505 = smul.addr %s504, 4
        %s506 = scalar_lea.vmem %s0, %s505
        %s507 = smul.u32 2, %s24
        %s508 = smul.u32 2, %s24
        %p509 = scmp.lt.s32.totalorder %s508, 3
        %s510 = scalar_select %p509, %s508, 3
        %s511 = smul.addr %s510, 2
        %s512 = smul.addr %s511, 4
        %s513 = scalar_lea.vmem %s1, %s512
        %s514 = smul.u32 2, %s24
        %s515 = smul.u32 2, %s24
        %p516 = scmp.lt.s32.totalorder %s515, 3
        %s517 = scalar_select %p516, %s515, 3
        %s518 = smul.addr %s517, 2
        %s519 = smul.addr %s518, 8
        %s520 = scalar_lea.vmem %s2, %s519
        %s521 = smul.u32 2, %s24
        %s522 = smul.u32 2, %s25
        %s523 = smul.u32 2, %s25
        %p524 = scmp.lt.s32.totalorder %s523, 3
        %s525 = scalar_select %p524, %s523, 3
        %s526 = scalar_lea.vmem %s8, %s525
        %s527 = smul.u32 2, %s25
        %p528 = scmp.lt.s32.totalorder %s24, 1
        %s529 = scalar_select %p528, %s24, 1
        %s530 = scalar_lea.vmem %s9, %s529
        %p532 = scmp.eq.s32.totalorder %s25, 0
        // Predicated region
        $region95: #{text2sql_loss.1} parent=89 // pred_check
          %p533 = pneg %p532
        $region96: #{text2sql_loss.1} parent=89 // pred_check_branch
          %535 = sbr.rel (%p533) target = $region98
        $region97: #{text2sql_loss.1} parent=89 // pred_region
          %v536 = vld [vmem:[%s506] sm:$0xf]
          %v537 = vld [vmem:[%s506 + $0x4] sm:$0xf]
          %v538 = vld [vmem:[%s506 + $0x8] sm:$0xf]
          %v539 = vld [vmem:[%s506 + $0xc] sm:$0xf]
          %v540 = vld [vmem:[%s3] sm:$0xff]
          %v541 = vld [vmem:[%s3 + $0x8] sm:$0xf]
          %v542 = vld [vmem:[%s3 + $0xc] sm:$0xff]
          %v543 = vld [vmem:[%s3 + $0x14] sm:$0xf]
          %v544 = vld [vmem:[%s3 + $0x18] sm:$0xff]
          %v545 = vld [vmem:[%s3 + $0x20] sm:$0xf]
          %v546 = vld [vmem:[%s3 + $0x24] sm:$0xff]
          %v547 = vld [vmem:[%s3 + $0x2c] sm:$0xf]
          %v548 = vld [vmem:[%s3 + $0x30] sm:$0xff]
          %v549 = vld [vmem:[%s3 + $0x38] sm:$0xf]
          %v550 = vld [vmem:[%s3 + $0x3c] sm:$0xff]
          %v551 = vld [vmem:[%s3 + $0x44] sm:$0xf]
          %v552 = vld [vmem:[%s3 + $0x48] sm:$0xff]
          %v553 = vld [vmem:[%s3 + $0x50] sm:$0xf]
          %v554 = vld [vmem:[%s3 + $0x54] sm:$0xff]
          %v555 = vld [vmem:[%s3 + $0x5c] sm:$0xf]
          %v556 = vld [vmem:[%s3 + $0x60] sm:$0xff]
          %v557 = vld [vmem:[%s3 + $0x68] sm:$0xf]
          %v558 = vld [vmem:[%s3 + $0x6c] sm:$0xff]
          %v559 = vld [vmem:[%s3 + $0x74] sm:$0xf]
          %v560 = vld [vmem:[%s3 + $0x78] sm:$0xff]
          %v561 = vld [vmem:[%s3 + $0x80] sm:$0xf]
          %v562 = vld [vmem:[%s3 + $0x84] sm:$0xff]
          %v563 = vld [vmem:[%s3 + $0x8c] sm:$0xf]
          %v564 = vld [vmem:[%s3 + $0x90] sm:$0xff]
          %v565 = vld [vmem:[%s3 + $0x98] sm:$0xf]
          %v566 = vld [vmem:[%s3 + $0x9c] sm:$0xff]
          %v567 = vld [vmem:[%s3 + $0xa4] sm:$0xf]
          %v568 = vld [vmem:[%s3 + $0xa8] sm:$0xff]
          %v569 = vld [vmem:[%s3 + $0xb0] sm:$0xf]
          %v570 = vld [vmem:[%s3 + $0xb4] sm:$0xff]
          %v571 = vld [vmem:[%s3 + $0xbc] sm:$0xf]
          %v576 = vunpack.c.l.b16 %v536
          %v577 = vunpack.c.l.b16 %v537
          %v578 = vunpack.c.l.b16 %v538
          %v579 = vunpack.c.l.b16 %v539
          %v580 = vpack.c.b16 %v577, %v576
          %v581 = vpack.c.b16 %v579, %v578
          %v616 = vunpack.c.l.b16 %v540
          %v617 = vunpack.c.h.b16 %v540
          %v618 = vunpack.c.l.b16 %v541
          %v619 = vunpack.c.l.b16 %v542
          %v620 = vunpack.c.h.b16 %v542
          %v621 = vunpack.c.l.b16 %v543
          %v622 = vunpack.c.l.b16 %v544
          %v623 = vunpack.c.h.b16 %v544
          %v624 = vunpack.c.l.b16 %v545
          %v625 = vunpack.c.l.b16 %v546
          %v626 = vunpack.c.h.b16 %v546
          %v627 = vunpack.c.l.b16 %v547
          %v628 = vunpack.c.l.b16 %v548
          %v629 = vunpack.c.h.b16 %v548
          %v630 = vunpack.c.l.b16 %v549
          %v631 = vunpack.c.l.b16 %v550
          %v632 = vunpack.c.h.b16 %v550
          %v633 = vunpack.c.l.b16 %v551
          %v634 = vunpack.c.l.b16 %v552
          %v635 = vunpack.c.h.b16 %v552
          %v636 = vunpack.c.l.b16 %v553
          %v637 = vunpack.c.l.b16 %v554
          %v638 = vunpack.c.h.b16 %v554
          %v639 = vunpack.c.l.b16 %v555
          %v640 = vunpack.c.l.b16 %v556
          %v641 = vunpack.c.h.b16 %v556
          %v642 = vunpack.c.l.b16 %v557
          %v643 = vunpack.c.l.b16 %v558
          %v644 = vunpack.c.h.b16 %v558
          %v645 = vunpack.c.l.b16 %v559
          %v646 = vunpack.c.l.b16 %v560
          %v647 = vunpack.c.h.b16 %v560
          %v648 = vunpack.c.l.b16 %v561
          %v649 = vunpack.c.l.b16 %v562
          %v650 = vunpack.c.h.b16 %v562
          %v651 = vunpack.c.l.b16 %v563
          %v652 = vunpack.c.l.b16 %v564
          %v653 = vunpack.c.h.b16 %v564
          %v654 = vunpack.c.l.b16 %v565
          %v655 = vunpack.c.l.b16 %v566
          %v656 = vunpack.c.h.b16 %v566
          %v657 = vunpack.c.l.b16 %v567
          %v658 = vunpack.c.l.b16 %v568
          %v659 = vunpack.c.h.b16 %v568
          %v660 = vunpack.c.l.b16 %v569
          %v661 = vunpack.c.l.b16 %v570
          %v662 = vunpack.c.h.b16 %v570
          %v663 = vunpack.c.l.b16 %v571
          %v664 = vpack.c.b16 %v619, %v616
          %v665 = vpack.c.b16 %v620, %v617
          %v666 = vpack.c.b16 %v621, %v618
          %v667 = vpack.c.b16 %v625, %v622
          %v668 = vpack.c.b16 %v626, %v623
          %v669 = vpack.c.b16 %v627, %v624
          %v670 = vpack.c.b16 %v631, %v628
          %v671 = vpack.c.b16 %v632, %v629
          %v672 = vpack.c.b16 %v633, %v630
          %v673 = vpack.c.b16 %v637, %v634
          %v674 = vpack.c.b16 %v638, %v635
          %v675 = vpack.c.b16 %v639, %v636
          %v676 = vpack.c.b16 %v643, %v640
          %v677 = vpack.c.b16 %v644, %v641
          %v678 = vpack.c.b16 %v645, %v642
          %v679 = vpack.c.b16 %v649, %v646
          %v680 = vpack.c.b16 %v650, %v647
          %v681 = vpack.c.b16 %v651, %v648
          %v682 = vpack.c.b16 %v655, %v652
          %v683 = vpack.c.b16 %v656, %v653
          %v684 = vpack.c.b16 %v657, %v654
          %v685 = vpack.c.b16 %v661, %v658
          %v686 = vpack.c.b16 %v662, %v659
          %v687 = vpack.c.b16 %v663, %v660
          %712 = vmatprep.subr.bf16.mxu0 %v665
          %713 = vmatpush1.bf16.msra.mxu0 %v664
          %714 = vmatprep.subr.bf16.mxu0 %v668
          %715 = vmatpush1.bf16.msra.mxu0 %v667
          %716 = vmatprep.subr.bf16.mxu0 %v671
          %717 = vmatpush1.bf16.msra.mxu0 %v670
          %718 = vmatprep.subr.bf16.mxu0 %v674
          %719 = vmatpush1.bf16.msra.mxu0 %v673
          %720 = vmatprep.subr.bf16.mxu0 %v677
          %721 = vmatpush1.bf16.msra.mxu0 %v676
          %722 = vmatprep.subr.bf16.mxu0 %v680
          %723 = vmatpush1.bf16.msra.mxu0 %v679
          %724 = vmatprep.subr.bf16.mxu0 %v683
          %725 = vmatpush1.bf16.msra.mxu0 %v682
          %726 = vmatprep.subr.bf16.mxu0 %v686
          %727 = vmatpush1.bf16.msra.mxu0 %v685
          %728 = vmatprep.subr.bf16.mxu0 0
          %729 = vmatpush1.bf16.msra.mxu0 0
          %730 = vmatprep.subr.bf16.mxu0 0
          %731 = vmatpush1.bf16.msra.mxu0 0
          %732 = vmatprep.subr.bf16.mxu0 0
          %733 = vmatpush1.bf16.msra.mxu0 0
          %734 = vmatprep.subr.bf16.mxu0 0
          %735 = vmatpush1.bf16.msra.mxu0 0
          %736 = vmatprep.subr.bf16.mxu0 0
          %737 = vmatpush1.bf16.msra.mxu0 0
          %738 = vmatprep.subr.bf16.mxu0 0
          %739 = vmatpush1.bf16.msra.mxu0 0
          %740 = vmatprep.subr.bf16.mxu0 0
          %741 = vmatpush1.bf16.msra.mxu0 0
          %742 = vmatprep.subr.bf16.mxu0 0
          %743 = vmatpush1.bf16.msra.mxu0 0
          %744 = vmatprep.mubr.bf16.mxu0 0
          %745 = vmatmul.mubr.bf16.gmra.mrb[0].mxu0 %v580
          %v746 = vpop.f32.mrb[0].mxu0
          %v747 = vadd.f32 0.0, %v746
          %v748 = vpop.f32.mrb[0].mxu0
          %v749 = vadd.f32 0.0, %v748
          %v750 = vpop.f32.mrb[0].mxu0
          %v751 = vadd.f32 0.0, %v750
          %v752 = vpop.f32.mrb[0].mxu0
          %v753 = vadd.f32 0.0, %v752
          %754 = vmatprep.mubr.bf16.mxu0 0
          %755 = vmatmul.mubr.bf16.gmra.mrb[0].mxu0 %v581
          %v756 = vpop.f32.mrb[0].mxu0
          %v757 = vadd.f32 0.0, %v756
          %v758 = vpop.f32.mrb[0].mxu0
          %v759 = vadd.f32 0.0, %v758
          %v760 = vpop.f32.mrb[0].mxu0
          %v761 = vadd.f32 0.0, %v760
          %v762 = vpop.f32.mrb[0].mxu0
          %v763 = vadd.f32 0.0, %v762
          %764 = vdwg.mxu0
          %765 = vmatprep.subr.bf16.mxu0 0
          %766 = vmatpush1.bf16.msra.mxu0 %v666
          %767 = vmatprep.subr.bf16.mxu0 0
          %768 = vmatpush1.bf16.msra.mxu0 %v669
          %769 = vmatprep.subr.bf16.mxu0 0
          %770 = vmatpush1.bf16.msra.mxu0 %v672
          %771 = vmatprep.subr.bf16.mxu0 0
          %772 = vmatpush1.bf16.msra.mxu0 %v675
          %773 = vmatprep.subr.bf16.mxu0 0
          %774 = vmatpush1.bf16.msra.mxu0 %v678
          %775 = vmatprep.subr.bf16.mxu0 0
          %776 = vmatpush1.bf16.msra.mxu0 %v681
          %777 = vmatprep.subr.bf16.mxu0 0
          %778 = vmatpush1.bf16.msra.mxu0 %v684
          %779 = vmatprep.subr.bf16.mxu0 0
          %780 = vmatpush1.bf16.msra.mxu0 %v687
          %781 = vmatprep.subr.bf16.mxu0 0
          %782 = vmatpush1.bf16.msra.mxu0 0
          %783 = vmatprep.subr.bf16.mxu0 0
          %784 = vmatpush1.bf16.msra.mxu0 0
          %785 = vmatprep.subr.bf16.mxu0 0
          %786 = vmatpush1.bf16.msra.mxu0 0
          %787 = vmatprep.subr.bf16.mxu0 0
          %788 = vmatpush1.bf16.msra.mxu0 0
          %789 = vmatprep.subr.bf16.mxu0 0
          %790 = vmatpush1.bf16.msra.mxu0 0
          %791 = vmatprep.subr.bf16.mxu0 0
          %792 = vmatpush1.bf16.msra.mxu0 0
          %793 = vmatprep.subr.bf16.mxu0 0
          %794 = vmatpush1.bf16.msra.mxu0 0
          %795 = vmatprep.subr.bf16.mxu0 0
          %796 = vmatpush1.bf16.msra.mxu0 0
          %797 = vmatprep.mubr.bf16.mxu0 0
          %798 = vmatmul.mubr.bf16.gmra.mrb[0].mxu0 %v580
          %v799 = vpop.f32.mrb[0].mxu0
          %v800 = vadd.f32 0.0, %v799
          %v801 = vpop.f32.mrb[0].mxu0
          %v802 = vpop.f32.mrb[0].mxu0
          %v803 = vadd.f32 0.0, %v802
          %v804 = vpop.f32.mrb[0].mxu0
          %805 = vmatprep.mubr.bf16.mxu0 0
          %806 = vmatmul.mubr.bf16.gmra.mrb[0].mxu0 %v581
          %v807 = vpop.f32.mrb[0].mxu0
          %v808 = vadd.f32 0.0, %v807
          %v809 = vpop.f32.mrb[0].mxu0
          %v810 = vpop.f32.mrb[0].mxu0
          %v811 = vadd.f32 0.0, %v810
          %v812 = vpop.f32.mrb[0].mxu0
          %813 = vdwg.mxu0
          %v814 = vpack.c.bf16 %v751, %v747
          %v815 = vpack.c.bf16 %v761, %v757
          %v816 = vpack.c.bf16 %v753, %v749
          %v817 = vpack.c.bf16 %v763, %v759
          %v818 = vpack.c.bf16 %v803, %v800
          %v819 = vpack.c.bf16 %v811, %v808
          %820 = vmatprep.subr.bf16.mxu0 0
          %821 = vmatpush1.bf16.xpose.msra.mxu0 %v816
          %822 = vmatprep.subr.bf16.mxu0 0
          %823 = vmatpush1.bf16.xpose.msra.mxu0 0
          %824 = vmatprep.subr.bf16.mxu0 0
          %825 = vmatpush1.bf16.xpose.msra.mxu0 0
          %826 = vmatprep.subr.bf16.mxu0 0
          %827 = vmatpush1.bf16.xpose.msra.mxu0 0
          %828 = vmatprep.subr.bf16.mxu0 0
          %829 = vmatpush1.bf16.xpose.msra.mxu0 0
          %830 = vmatprep.subr.bf16.mxu0 0
          %831 = vmatpush1.bf16.xpose.msra.mxu0 0
          %832 = vmatprep.subr.bf16.mxu0 0
          %833 = vmatpush1.bf16.xpose.msra.mxu0 0
          %834 = vmatprep.subr.bf16.mxu0 0
          %835 = vmatpush1.bf16.xpose.msra.mxu0 0
          %836 = vmatprep.subr.bf16.mxu0 0
          %837 = vmatpush1.bf16.xpose.msra.mxu0 0
          %838 = vmatprep.subr.bf16.mxu0 0
          %839 = vmatpush1.bf16.xpose.msra.mxu0 0
          %840 = vmatprep.subr.bf16.mxu0 0
          %841 = vmatpush1.bf16.xpose.msra.mxu0 0
          %842 = vmatprep.subr.bf16.mxu0 0
          %843 = vmatpush1.bf16.xpose.msra.mxu0 0
          %844 = vmatprep.subr.bf16.mxu0 0
          %845 = vmatpush1.bf16.xpose.msra.mxu0 0
          %846 = vmatprep.subr.bf16.mxu0 0
          %847 = vmatpush1.bf16.xpose.msra.mxu0 0
          %848 = vmatprep.subr.bf16.mxu0 0
          %849 = vmatpush1.bf16.xpose.msra.mxu0 0
          %850 = vmatprep.subr.bf16.mxu0 0
          %851 = vmatpush1.bf16.xpose.msra.mxu0 0
          %852 = vmatprep.mubr.bf16.mxu0 0
          %853 = vmatmul.mubr.bf16.gmra.mrb[0].mxu0 %v814
          %v854 = vpop.f32.mrb[0].mxu0
          %v855 = vadd.f32 0.0, %v854
          %v856 = vpop.f32.mrb[0].mxu0
          %v857 = vpop.f32.mrb[0].mxu0
          %v858 = vadd.f32 0.0, %v857
          %v859 = vpop.f32.mrb[0].mxu0
          %860 = vdwg.mxu0
          %861 = vmatprep.subr.bf16.mxu0 0
          %862 = vmatpush1.bf16.xpose.msra.mxu0 %v817
          %863 = vmatprep.subr.bf16.mxu0 0
          %864 = vmatpush1.bf16.xpose.msra.mxu0 0
          %865 = vmatprep.subr.bf16.mxu0 0
          %866 = vmatpush1.bf16.xpose.msra.mxu0 0
          %867 = vmatprep.subr.bf16.mxu0 0
          %868 = vmatpush1.bf16.xpose.msra.mxu0 0
          %869 = vmatprep.subr.bf16.mxu0 0
          %870 = vmatpush1.bf16.xpose.msra.mxu0 0
          %871 = vmatprep.subr.bf16.mxu0 0
          %872 = vmatpush1.bf16.xpose.msra.mxu0 0
          %873 = vmatprep.subr.bf16.mxu0 0
          %874 = vmatpush1.bf16.xpose.msra.mxu0 0
          %875 = vmatprep.subr.bf16.mxu0 0
          %876 = vmatpush1.bf16.xpose.msra.mxu0 0
          %877 = vmatprep.subr.bf16.mxu0 0
          %878 = vmatpush1.bf16.xpose.msra.mxu0 0
          %879 = vmatprep.subr.bf16.mxu0 0
          %880 = vmatpush1.bf16.xpose.msra.mxu0 0
          %881 = vmatprep.subr.bf16.mxu0 0
          %882 = vmatpush1.bf16.xpose.msra.mxu0 0
          %883 = vmatprep.subr.bf16.mxu0 0
          %884 = vmatpush1.bf16.xpose.msra.mxu0 0
          %885 = vmatprep.subr.bf16.mxu0 0
          %886 = vmatpush1.bf16.xpose.msra.mxu0 0
          %887 = vmatprep.subr.bf16.mxu0 0
          %888 = vmatpush1.bf16.xpose.msra.mxu0 0
          %889 = vmatprep.subr.bf16.mxu0 0
          %890 = vmatpush1.bf16.xpose.msra.mxu0 0
          %891 = vmatprep.subr.bf16.mxu0 0
          %892 = vmatpush1.bf16.xpose.msra.mxu0 0
          %893 = vmatprep.mubr.bf16.mxu0 0
          %894 = vmatmul.mubr.bf16.gmra.mrb[0].mxu0 %v815
          %v895 = vpop.f32.mrb[0].mxu0
          %v896 = vadd.f32 0.0, %v895
          %v897 = vpop.f32.mrb[0].mxu0
          %v898 = vpop.f32.mrb[0].mxu0
          %v899 = vadd.f32 0.0, %v898
          %v900 = vpop.f32.mrb[0].mxu0
          %901 = vdwg.mxu0
          %vm902 = vcmask 130048
          %v903 = vsel %vm902, %v855, -inf
          %904 = vmax.xlane.f32.xlu0 %v903
          %v905 = vpop.xlane.xlu0 %904
          %v906 = vsel %vm902, %v858, -inf
          %907 = vmax.xlane.f32.xlu0 %v906
          %v908 = vpop.xlane.xlu0 %907
          %v909 = vsel %vm902, %v896, -inf
          %910 = vmax.xlane.f32.xlu0 %v909
          %v911 = vpop.xlane.xlu0 %910
          %v912 = vsel %vm902, %v899, -inf
          %913 = vmax.xlane.f32.xlu0 %v912
          %v914 = vpop.xlane.xlu0 %913
          %v915 = vsub.f32 %v855, %v905
          %v916 = vsub.f32 %v858, %v908
          %v917 = vsub.f32 %v896, %v911
          %v918 = vsub.f32 %v899, %v914
          %v919 = vmul.f32 %v915, 1.442695
          %v920 = vpow.pop %v919
          %v921 = vmul.f32 %v916, 1.442695
          %v922 = vpow.pop %v921
          %v923 = vmul.f32 %v917, 1.442695
          %v924 = vpow.pop %v923
          %v925 = vmul.f32 %v918, 1.442695
          %v926 = vpow.pop %v925
          %v927 = vsel %vm902, %v920, 0.0
          %928 = vadd.xlane.f32.xlu0 %v927
          %v929 = vpop.xlane.xlu0 %928
          %v930 = vsel %vm902, %v922, 0.0
          %931 = vadd.xlane.f32.xlu0 %v930
          %v932 = vpop.xlane.xlu0 %931
          %v933 = vsel %vm902, %v924, 0.0
          %934 = vadd.xlane.f32.xlu0 %v933
          %v935 = vpop.xlane.xlu0 %934
          %v936 = vsel %vm902, %v926, 0.0
          %937 = vadd.xlane.f32.xlu0 %v936
          %v938 = vpop.xlane.xlu0 %937
          %v939 = vrcp.pop %v929
          %v940 = vrcp.pop %v932
          %v941 = vrcp.pop %v935
          %v942 = vrcp.pop %v938
          %v943 = vmul.f32 %v920, %v939
          %v944 = vmul.f32 %v922, %v940
          %v945 = vmul.f32 %v924, %v941
          %v946 = vmul.f32 %v926, %v942
          %v947 = vpack.c.bf16 %v944, %v943
          %v948 = vpack.c.bf16 %v946, %v945
          %v950 = vsel %vm902, %v947, 0
          %952 = vmatprep.subr.bf16.mxu0 0
          %953 = vmatpush1.bf16.msra.mxu0 %v818
          %954 = vmatprep.subr.bf16.mxu0 0
          %955 = vmatpush1.bf16.msra.mxu0 0
          %956 = vmatprep.subr.bf16.mxu0 0
          %957 = vmatpush1.bf16.msra.mxu0 0
          %958 = vmatprep.subr.bf16.mxu0 0
          %959 = vmatpush1.bf16.msra.mxu0 0
          %960 = vmatprep.subr.bf16.mxu0 0
          %961 = vmatpush1.bf16.msra.mxu0 0
          %962 = vmatprep.subr.bf16.mxu0 0
          %963 = vmatpush1.bf16.msra.mxu0 0
          %964 = vmatprep.subr.bf16.mxu0 0
          %965 = vmatpush1.bf16.msra.mxu0 0
          %966 = vmatprep.subr.bf16.mxu0 0
          %967 = vmatpush1.bf16.msra.mxu0 0
          %968 = vmatprep.subr.bf16.mxu0 0
          %969 = vmatpush1.bf16.msra.mxu0 0
          %970 = vmatprep.subr.bf16.mxu0 0
          %971 = vmatpush1.bf16.msra.mxu0 0
          %972 = vmatprep.subr.bf16.mxu0 0
          %973 = vmatpush1.bf16.msra.mxu0 0
          %974 = vmatprep.subr.bf16.mxu0 0
          %975 = vmatpush1.bf16.msra.mxu0 0
          %976 = vmatprep.subr.bf16.mxu0 0
          %977 = vmatpush1.bf16.msra.mxu0 0
          %978 = vmatprep.subr.bf16.mxu0 0
          %979 = vmatpush1.bf16.msra.mxu0 0
          %980 = vmatprep.subr.bf16.mxu0 0
          %981 = vmatpush1.bf16.msra.mxu0 0
          %982 = vmatprep.subr.bf16.mxu0 0
          %983 = vmatpush1.bf16.msra.mxu0 0
          %984 = vmatprep.mubr.bf16.mxu0 0
          %985 = vmatmul.mubr.bf16.gmra.mrb[0].mxu0 %v950
          %v986 = vpop.f32.mrb[0].mxu0
          %v987 = vadd.f32 0.0, %v986
          %v988 = vpop.f32.mrb[0].mxu0
          %v989 = vpop.f32.mrb[0].mxu0
          %v990 = vadd.f32 0.0, %v989
          %v991 = vpop.f32.mrb[0].mxu0
          %992 = vdwg.mxu0
          %v994 = vsel %vm902, %v948, 0
          %996 = vmatprep.subr.bf16.mxu0 0
          %997 = vmatpush1.bf16.msra.mxu0 %v819
          %998 = vmatprep.subr.bf16.mxu0 0
          %999 = vmatpush1.bf16.msra.mxu0 0
          %1000 = vmatprep.subr.bf16.mxu0 0
          %1001 = vmatpush1.bf16.msra.mxu0 0
          %1002 = vmatprep.subr.bf16.mxu0 0
          %1003 = vmatpush1.bf16.msra.mxu0 0
          %1004 = vmatprep.subr.bf16.mxu0 0
          %1005 = vmatpush1.bf16.msra.mxu0 0
          %1006 = vmatprep.subr.bf16.mxu0 0
          %1007 = vmatpush1.bf16.msra.mxu0 0
          %1008 = vmatprep.subr.bf16.mxu0 0
          %1009 = vmatpush1.bf16.msra.mxu0 0
          %1010 = vmatprep.subr.bf16.mxu0 0
          %1011 = vmatpush1.bf16.msra.mxu0 0
          %1012 = vmatprep.subr.bf16.mxu0 0
          %1013 = vmatpush1.bf16.msra.mxu0 0
          %1014 = vmatprep.subr.bf16.mxu0 0
          %1015 = vmatpush1.bf16.msra.mxu0 0
          %1016 = vmatprep.subr.bf16.mxu0 0
          %1017 = vmatpush1.bf16.msra.mxu0 0
          %1018 = vmatprep.subr.bf16.mxu0 0
          %1019 = vmatpush1.bf16.msra.mxu0 0
          %1020 = vmatprep.subr.bf16.mxu0 0
          %1021 = vmatpush1.bf16.msra.mxu0 0
          %1022 = vmatprep.subr.bf16.mxu0 0
          %1023 = vmatpush1.bf16.msra.mxu0 0
          %1024 = vmatprep.subr.bf16.mxu0 0
          %1025 = vmatpush1.bf16.msra.mxu0 0
          %1026 = vmatprep.subr.bf16.mxu0 0
          %1027 = vmatpush1.bf16.msra.mxu0 0
          %1028 = vmatprep.mubr.bf16.mxu0 0
          %1029 = vmatmul.mubr.bf16.gmra.mrb[0].mxu0 %v994
          %v1030 = vpop.f32.mrb[0].mxu0
          %v1031 = vadd.f32 0.0, %v1030
          %v1032 = vpop.f32.mrb[0].mxu0
          %v1033 = vpop.f32.mrb[0].mxu0
          %v1034 = vadd.f32 0.0, %v1033
          %v1035 = vpop.f32.mrb[0].mxu0
          %1036 = vdwg.mxu0
          %v1037 = vpack.c.bf16 %v990, %v987
          %v1038 = vpack.c.bf16 %v1034, %v1031
          %v1039 = vld [vmem:[%s4] sm:$0xf]
          %v1040 = vld [vmem:[%s4 + $0x4] sm:$0xf]
          %v1041 = vld [vmem:[%s4 + $0x8] sm:$0xf]
          %v1042 = vld [vmem:[%s4 + $0xc] sm:$0xf]
          %v1043 = vld [vmem:[%s4 + $0x10] sm:$0xf]
          %v1044 = vld [vmem:[%s4 + $0x14] sm:$0xf]
          %v1045 = vld [vmem:[%s4 + $0x18] sm:$0xf]
          %v1046 = vld [vmem:[%s4 + $0x1c] sm:$0xf]
          %v1047 = vld [vmem:[%s4 + $0x20] sm:$0xf]
          %v1048 = vld [vmem:[%s4 + $0x24] sm:$0xf]
          %v1049 = vld [vmem:[%s4 + $0x28] sm:$0xf]
          %v1050 = vld [vmem:[%s4 + $0x2c] sm:$0xf]
          %v1051 = vld [vmem:[%s4 + $0x30] sm:$0xf]
          %v1052 = vld [vmem:[%s4 + $0x34] sm:$0xf]
          %v1053 = vld [vmem:[%s4 + $0x38] sm:$0xf]
          %v1054 = vld [vmem:[%s4 + $0x3c] sm:$0xf]
          %v1055 = vld [vmem:[%s5] sm:$0x1]
          %v1057 = vlaneseq
          %v1058 = vshrl.u32 %v1057, 7
          %v1059 = vsub.s32 0, %v1058
          %v1060 = vrot.slane %v1055, %v1059
          %v1078 = vunpack.c.l.b16 %v1039
          %v1079 = vunpack.c.l.b16 %v1040
          %v1080 = vunpack.c.l.b16 %v1041
          %v1081 = vunpack.c.l.b16 %v1042
          %v1082 = vunpack.c.l.b16 %v1043
          %v1083 = vunpack.c.l.b16 %v1044
          %v1084 = vunpack.c.l.b16 %v1045
          %v1085 = vunpack.c.l.b16 %v1046
          %v1086 = vunpack.c.l.b16 %v1047
          %v1087 = vunpack.c.l.b16 %v1048
          %v1088 = vunpack.c.l.b16 %v1049
          %v1089 = vunpack.c.l.b16 %v1050
          %v1090 = vunpack.c.l.b16 %v1051
          %v1091 = vunpack.c.l.b16 %v1052
          %v1092 = vunpack.c.l.b16 %v1053
          %v1093 = vunpack.c.l.b16 %v1054
          %v1094 = vpack.c.b16 %v1079, %v1078
          %v1095 = vpack.c.b16 %v1081, %v1080
          %v1096 = vpack.c.b16 %v1083, %v1082
          %v1097 = vpack.c.b16 %v1085, %v1084
          %v1098 = vpack.c.b16 %v1087, %v1086
          %v1099 = vpack.c.b16 %v1089, %v1088
          %v1100 = vpack.c.b16 %v1091, %v1090
          %v1101 = vpack.c.b16 %v1093, %v1092
          %1110 = vmatprep.subr.bf16.mxu0 0
          %1111 = vmatpush1.bf16.msra.mxu0 %v1094
          %1112 = vmatprep.subr.bf16.mxu0 0
          %1113 = vmatpush1.bf16.msra.mxu0 %v1095
          %1114 = vmatprep.subr.bf16.mxu0 0
          %1115 = vmatpush1.bf16.msra.mxu0 %v1096
          %1116 = vmatprep.subr.bf16.mxu0 0
          %1117 = vmatpush1.bf16.msra.mxu0 %v1097
          %1118 = vmatprep.subr.bf16.mxu0 0
          %1119 = vmatpush1.bf16.msra.mxu0 %v1098
          %1120 = vmatprep.subr.bf16.mxu0 0
          %1121 = vmatpush1.bf16.msra.mxu0 %v1099
          %1122 = vmatprep.subr.bf16.mxu0 0
          %1123 = vmatpush1.bf16.msra.mxu0 %v1100
          %1124 = vmatprep.subr.bf16.mxu0 0
          %1125 = vmatpush1.bf16.msra.mxu0 %v1101
          %1126 = vmatprep.subr.bf16.mxu0 0
          %1127 = vmatpush1.bf16.msra.mxu0 0
          %1128 = vmatprep.subr.bf16.mxu0 0
          %1129 = vmatpush1.bf16.msra.mxu0 0
          %1130 = vmatprep.subr.bf16.mxu0 0
          %1131 = vmatpush1.bf16.msra.mxu0 0
          %1132 = vmatprep.subr.bf16.mxu0 0
          %1133 = vmatpush1.bf16.msra.mxu0 0
          %1134 = vmatprep.subr.bf16.mxu0 0
          %1135 = vmatpush1.bf16.msra.mxu0 0
          %1136 = vmatprep.subr.bf16.mxu0 0
          %1137 = vmatpush1.bf16.msra.mxu0 0
          %1138 = vmatprep.subr.bf16.mxu0 0
          %1139 = vmatpush1.bf16.msra.mxu0 0
          %1140 = vmatprep.subr.bf16.mxu0 0
          %1141 = vmatpush1.bf16.msra.mxu0 0
          %1142 = vmatprep.mubr.bf16.mxu0 0
          %1143 = vmatmul.mubr.bf16.gmra.mrb[0].mxu0 %v1037
          %v1144 = vpop.f32.mrb[0].mxu0
          %v1145 = vadd.f32 %v1060, %v1144
          %v1146 = vpop.f32.mrb[0].mxu0
          %v1147 = vpop.f32.mrb[0].mxu0
          %v1148 = vadd.f32 %v1060, %v1147
          %v1149 = vpop.f32.mrb[0].mxu0
          %1150 = vmatprep.mubr.bf16.mxu0 0
          %1151 = vmatmul.mubr.bf16.gmra.mrb[0].mxu0 %v1038
          %v1152 = vpop.f32.mrb[0].mxu0
          %v1153 = vadd.f32 %v1060, %v1152
          %v1154 = vpop.f32.mrb[0].mxu0
          %v1155 = vpop.f32.mrb[0].mxu0
          %v1156 = vadd.f32 %v1060, %v1155
          %v1157 = vpop.f32.mrb[0].mxu0
          %1158 = vdwg.mxu0
          %v1159 = vmax.f32 %v1145, 0.0
          %v1160 = vmax.f32 %v1148, 0.0
          %v1161 = vmax.f32 %v1153, 0.0
          %v1162 = vmax.f32 %v1156, 0.0
          %v1163 = vpack.c.bf16 %v1160, %v1159
          %v1164 = vpack.c.bf16 %v1162, %v1161
          %v1165 = vld [vmem:[%s513] sm:$0xf]
          %v1166 = vld [vmem:[%s513 + $0x4] sm:$0xf]
          %v1167 = vld [vmem:[%s513 + $0x8] sm:$0xf]
          %v1168 = vld [vmem:[%s513 + $0xc] sm:$0xf]
          %v1169 = vld [vmem:[%s6] sm:$0xf]
          %v1170 = vld [vmem:[%s6 + $0x4] sm:$0xf]
          %v1171 = vld [vmem:[%s6 + $0x8] sm:$0xf]
          %v1172 = vld [vmem:[%s6 + $0xc] sm:$0xf]
          %v1173 = vld [vmem:[%s6 + $0x10] sm:$0xf]
          %v1174 = vld [vmem:[%s6 + $0x14] sm:$0xf]
          %v1175 = vld [vmem:[%s6 + $0x18] sm:$0xf]
          %v1176 = vld [vmem:[%s6 + $0x1c] sm:$0xf]
          %v1177 = vld [vmem:[%s6 + $0x20] sm:$0xf]
          %v1178 = vld [vmem:[%s6 + $0x24] sm:$0xf]
          %v1179 = vld [vmem:[%s6 + $0x28] sm:$0xf]
          %v1180 = vld [vmem:[%s6 + $0x2c] sm:$0xf]
          %v1181 = vld [vmem:[%s6 + $0x30] sm:$0xf]
          %v1182 = vld [vmem:[%s6 + $0x34] sm:$0xf]
          %v1183 = vld [vmem:[%s6 + $0x38] sm:$0xf]
          %v1184 = vld [vmem:[%s6 + $0x3c] sm:$0xf]
          %v1189 = vunpack.c.l.b16 %v1165
          %v1190 = vunpack.c.l.b16 %v1166
          %v1191 = vunpack.c.l.b16 %v1167
          %v1192 = vunpack.c.l.b16 %v1168
          %v1193 = vpack.c.b16 %v1190, %v1189
          %v1194 = vpack.c.b16 %v1192, %v1191
          %v1213 = vunpack.c.l.b16 %v1169
          %v1214 = vunpack.c.l.b16 %v1170
          %v1215 = vunpack.c.l.b16 %v1171
          %v1216 = vunpack.c.l.b16 %v1172
          %v1217 = vunpack.c.l.b16 %v1173
          %v1218 = vunpack.c.l.b16 %v1174
          %v1219 = vunpack.c.l.b16 %v1175
          %v1220 = vunpack.c.l.b16 %v1176
          %v1221 = vunpack.c.l.b16 %v1177
          %v1222 = vunpack.c.l.b16 %v1178
          %v1223 = vunpack.c.l.b16 %v1179
          %v1224 = vunpack.c.l.b16 %v1180
          %v1225 = vunpack.c.l.b16 %v1181
          %v1226 = vunpack.c.l.b16 %v1182
          %v1227 = vunpack.c.l.b16 %v1183
          %v1228 = vunpack.c.l.b16 %v1184
          %v1229 = vpack.c.b16 %v1214, %v1213
          %v1230 = vpack.c.b16 %v1216, %v1215
          %v1231 = vpack.c.b16 %v1218, %v1217
          %v1232 = vpack.c.b16 %v1220, %v1219
          %v1233 = vpack.c.b16 %v1222, %v1221
          %v1234 = vpack.c.b16 %v1224, %v1223
          %v1235 = vpack.c.b16 %v1226, %v1225
          %v1236 = vpack.c.b16 %v1228, %v1227
          %1245 = vmatprep.subr.bf16.mxu0 0
          %1246 = vmatpush1.bf16.msra.mxu0 %v1229
          %1247 = vmatprep.subr.bf16.mxu0 0
          %1248 = vmatpush1.bf16.msra.mxu0 %v1230
          %1249 = vmatprep.subr.bf16.mxu0 0
          %1250 = vmatpush1.bf16.msra.mxu0 %v1231
          %1251 = vmatprep.subr.bf16.mxu0 0
          %1252 = vmatpush1.bf16.msra.mxu0 %v1232
          %1253 = vmatprep.subr.bf16.mxu0 0
          %1254 = vmatpush1.bf16.msra.mxu0 %v1233
          %1255 = vmatprep.subr.bf16.mxu0 0
          %1256 = vmatpush1.bf16.msra.mxu0 %v1234
          %1257 = vmatprep.subr.bf16.mxu0 0
          %1258 = vmatpush1.bf16.msra.mxu0 %v1235
          %1259 = vmatprep.subr.bf16.mxu0 0
          %1260 = vmatpush1.bf16.msra.mxu0 %v1236
          %1261 = vmatprep.subr.bf16.mxu0 0
          %1262 = vmatpush1.bf16.msra.mxu0 0
          %1263 = vmatprep.subr.bf16.mxu0 0
          %1264 = vmatpush1.bf16.msra.mxu0 0
          %1265 = vmatprep.subr.bf16.mxu0 0
          %1266 = vmatpush1.bf16.msra.mxu0 0
          %1267 = vmatprep.subr.bf16.mxu0 0
          %1268 = vmatpush1.bf16.msra.mxu0 0
          %1269 = vmatprep.subr.bf16.mxu0 0
          %1270 = vmatpush1.bf16.msra.mxu0 0
          %1271 = vmatprep.subr.bf16.mxu0 0
          %1272 = vmatpush1.bf16.msra.mxu0 0
          %1273 = vmatprep.subr.bf16.mxu0 0
          %1274 = vmatpush1.bf16.msra.mxu0 0
          %1275 = vmatprep.subr.bf16.mxu0 0
          %1276 = vmatpush1.bf16.msra.mxu0 0
          %1277 = vmatprep.mubr.bf16.mxu0 0
          %1278 = vmatmul.mubr.bf16.gmra.mrb[0].mxu0 %v1193
          %v1279 = vpop.f32.mrb[0].mxu0
          %v1280 = vadd.f32 0.0, %v1279
          %v1281 = vpop.f32.mrb[0].mxu0
          %v1282 = vpop.f32.mrb[0].mxu0
          %v1283 = vadd.f32 0.0, %v1282
          %v1284 = vpop.f32.mrb[0].mxu0
          %1285 = vmatprep.mubr.bf16.mxu0 0
          %1286 = vmatmul.mubr.bf16.gmra.mrb[0].mxu0 %v1194
          %v1287 = vpop.f32.mrb[0].mxu0
          %v1288 = vadd.f32 0.0, %v1287
          %v1289 = vpop.f32.mrb[0].mxu0
          %v1290 = vpop.f32.mrb[0].mxu0
          %v1291 = vadd.f32 0.0, %v1290
          %v1292 = vpop.f32.mrb[0].mxu0
          %1293 = vdwg.mxu0
          %v1294 = vpack.c.bf16 %v1283, %v1280
          %v1295 = vpack.c.bf16 %v1291, %v1288
          %1296 = vmatprep.subr.bf16.mxu0 0
          %1297 = vmatpush1.bf16.xpose.msra.mxu0 %v1163
          %1298 = vmatprep.subr.bf16.mxu0 0
          %1299 = vmatpush1.bf16.xpose.msra.mxu0 0
          %1300 = vmatprep.subr.bf16.mxu0 0
          %1301 = vmatpush1.bf16.xpose.msra.mxu0 0
          %1302 = vmatprep.subr.bf16.mxu0 0
          %1303 = vmatpush1.bf16.xpose.msra.mxu0 0
          %1304 = vmatprep.subr.bf16.mxu0 0
          %1305 = vmatpush1.bf16.xpose.msra.mxu0 0
          %1306 = vmatprep.subr.bf16.mxu0 0
          %1307 = vmatpush1.bf16.xpose.msra.mxu0 0
          %1308 = vmatprep.subr.bf16.mxu0 0
          %1309 = vmatpush1.bf16.xpose.msra.mxu0 0
          %1310 = vmatprep.subr.bf16.mxu0 0
          %1311 = vmatpush1.bf16.xpose.msra.mxu0 0
          %1312 = vmatprep.subr.bf16.mxu0 0
          %1313 = vmatpush1.bf16.xpose.msra.mxu0 0
          %1314 = vmatprep.subr.bf16.mxu0 0
          %1315 = vmatpush1.bf16.xpose.msra.mxu0 0
          %1316 = vmatprep.subr.bf16.mxu0 0
          %1317 = vmatpush1.bf16.xpose.msra.mxu0 0
          %1318 = vmatprep.subr.bf16.mxu0 0
          %1319 = vmatpush1.bf16.xpose.msra.mxu0 0
          %1320 = vmatprep.subr.bf16.mxu0 0
          %1321 = vmatpush1.bf16.xpose.msra.mxu0 0
          %1322 = vmatprep.subr.bf16.mxu0 0
          %1323 = vmatpush1.bf16.xpose.msra.mxu0 0
          %1324 = vmatprep.subr.bf16.mxu0 0
          %1325 = vmatpush1.bf16.xpose.msra.mxu0 0
          %1326 = vmatprep.subr.bf16.mxu0 0
          %1327 = vmatpush1.bf16.xpose.msra.mxu0 0
          %1328 = vmatprep.mubr.bf16.mxu0 0
          %1329 = vmatmul.mubr.bf16.gmra.mrb[0].mxu0 %v1294
          %v1330 = vpop.f32.mrb[0].mxu0
          %v1331 = vadd.f32 0.0, %v1330
          %v1332 = vpop.f32.mrb[0].mxu0
          %v1333 = vpop.f32.mrb[0].mxu0
          %v1334 = vadd.f32 0.0, %v1333
          %v1335 = vpop.f32.mrb[0].mxu0
          %1336 = vdwg.mxu0
          %1337 = vmatprep.subr.bf16.mxu0 0
          %1338 = vmatpush1.bf16.xpose.msra.mxu0 %v1164
          %1339 = vmatprep.subr.bf16.mxu0 0
          %1340 = vmatpush1.bf16.xpose.msra.mxu0 0
          %1341 = vmatprep.subr.bf16.mxu0 0
          %1342 = vmatpush1.bf16.xpose.msra.mxu0 0
          %1343 = vmatprep.subr.bf16.mxu0 0
          %1344 = vmatpush1.bf16.xpose.msra.mxu0 0
          %1345 = vmatprep.subr.bf16.mxu0 0
          %1346 = vmatpush1.bf16.xpose.msra.mxu0 0
          %1347 = vmatprep.subr.bf16.mxu0 0
          %1348 = vmatpush1.bf16.xpose.msra.mxu0 0
          %1349 = vmatprep.subr.bf16.mxu0 0
          %1350 = vmatpush1.bf16.xpose.msra.mxu0 0
          %1351 = vmatprep.subr.bf16.mxu0 0
          %1352 = vmatpush1.bf16.xpose.msra.mxu0 0
          %1353 = vmatprep.subr.bf16.mxu0 0
          %1354 = vmatpush1.bf16.xpose.msra.mxu0 0
          %1355 = vmatprep.subr.bf16.mxu0 0
          %1356 = vmatpush1.bf16.xpose.msra.mxu0 0
          %1357 = vmatprep.subr.bf16.mxu0 0
          %1358 = vmatpush1.bf16.xpose.msra.mxu0 0
          %1359 = vmatprep.subr.bf16.mxu0 0
          %1360 = vmatpush1.bf16.xpose.msra.mxu0 0
          %1361 = vmatprep.subr.bf16.mxu0 0
          %1362 = vmatpush1.bf16.xpose.msra.mxu0 0
          %1363 = vmatprep.subr.bf16.mxu0 0
          %1364 = vmatpush1.bf16.xpose.msra.mxu0 0
          %1365 = vmatprep.subr.bf16.mxu0 0
          %1366 = vmatpush1.bf16.xpose.msra.mxu0 0
          %1367 = vmatprep.subr.bf16.mxu0 0
          %1368 = vmatpush1.bf16.xpose.msra.mxu0 0
          %1369 = vmatprep.mubr.bf16.mxu0 0
          %1370 = vmatmul.mubr.bf16.gmra.mrb[0].mxu0 %v1295
          %v1371 = vpop.f32.mrb[0].mxu0
          %v1372 = vadd.f32 0.0, %v1371
          %v1373 = vpop.f32.mrb[0].mxu0
          %v1374 = vpop.f32.mrb[0].mxu0
          %v1375 = vadd.f32 0.0, %v1374
          %v1376 = vpop.f32.mrb[0].mxu0
          %1377 = vdwg.mxu0
          %v1378 = vsel %vm902, %v1331, -inf
          %1379 = vmax.xlane.f32.xlu0 %v1378
          %v1380 = vpop.xlane.xlu0 %1379
          %v1381 = vsel %vm902, %v1334, -inf
          %1382 = vmax.xlane.f32.xlu0 %v1381
          %v1383 = vpop.xlane.xlu0 %1382
          %v1384 = vsel %vm902, %v1372, -inf
          %1385 = vmax.xlane.f32.xlu0 %v1384
          %v1386 = vpop.xlane.xlu0 %1385
          %v1387 = vsel %vm902, %v1375, -inf
          %1388 = vmax.xlane.f32.xlu0 %v1387
          %v1389 = vpop.xlane.xlu0 %1388
          %v1390 = vsub.f32 %v1331, %v1380
          %v1391 = vsub.f32 %v1334, %v1383
          %v1392 = vsub.f32 %v1372, %v1386
          %v1393 = vsub.f32 %v1375, %v1389
          %v1394 = vmul.f32 %v1390, 1.442695
          %v1395 = vpow.pop %v1394
          %v1396 = vmul.f32 %v1391, 1.442695
          %v1397 = vpow.pop %v1396
          %v1398 = vmul.f32 %v1392, 1.442695
          %v1399 = vpow.pop %v1398
          %v1400 = vmul.f32 %v1393, 1.442695
          %v1401 = vpow.pop %v1400
          %v1402 = vsel %vm902, %v1395, 0.0
          %1403 = vadd.xlane.f32.xlu0 %v1402
          %v1404 = vpop.xlane.xlu0 %1403
          %v1405 = vsel %vm902, %v1397, 0.0
          %1406 = vadd.xlane.f32.xlu0 %v1405
          %v1407 = vpop.xlane.xlu0 %1406
          %v1408 = vsel %vm902, %v1399, 0.0
          %1409 = vadd.xlane.f32.xlu0 %v1408
          %v1410 = vpop.xlane.xlu0 %1409
          %v1411 = vsel %vm902, %v1401, 0.0
          %1412 = vadd.xlane.f32.xlu0 %v1411
          %v1413 = vpop.xlane.xlu0 %1412
          %v1414 = vrcp.pop %v1404
          %v1415 = vrcp.pop %v1407
          %v1416 = vrcp.pop %v1410
          %v1417 = vrcp.pop %v1413
          %v1418 = vmul.f32 %v1395, %v1414
          %v1419 = vmul.f32 %v1397, %v1415
          %v1420 = vmul.f32 %v1399, %v1416
          %v1421 = vmul.f32 %v1401, %v1417
          %v1422 = vpack.c.bf16 %v1419, %v1418
          %v1423 = vpack.c.bf16 %v1421, %v1420
          %v1425 = vsel %vm902, %v1422, 0
          %1427 = vmatprep.subr.bf16.mxu0 0
          %1428 = vmatpush1.bf16.msra.mxu0 %v1163
          %1429 = vmatprep.subr.bf16.mxu0 0
          %1430 = vmatpush1.bf16.msra.mxu0 0
          %1431 = vmatprep.subr.bf16.mxu0 0
          %1432 = vmatpush1.bf16.msra.mxu0 0
          %1433 = vmatprep.subr.bf16.mxu0 0
          %1434 = vmatpush1.bf16.msra.mxu0 0
          %1435 = vmatprep.subr.bf16.mxu0 0
          %1436 = vmatpush1.bf16.msra.mxu0 0
          %1437 = vmatprep.subr.bf16.mxu0 0
          %1438 = vmatpush1.bf16.msra.mxu0 0
          %1439 = vmatprep.subr.bf16.mxu0 0
          %1440 = vmatpush1.bf16.msra.mxu0 0
          %1441 = vmatprep.subr.bf16.mxu0 0
          %1442 = vmatpush1.bf16.msra.mxu0 0
          %1443 = vmatprep.subr.bf16.mxu0 0
          %1444 = vmatpush1.bf16.msra.mxu0 0
          %1445 = vmatprep.subr.bf16.mxu0 0
          %1446 = vmatpush1.bf16.msra.mxu0 0
          %1447 = vmatprep.subr.bf16.mxu0 0
          %1448 = vmatpush1.bf16.msra.mxu0 0
          %1449 = vmatprep.subr.bf16.mxu0 0
          %1450 = vmatpush1.bf16.msra.mxu0 0
          %1451 = vmatprep.subr.bf16.mxu0 0
          %1452 = vmatpush1.bf16.msra.mxu0 0
          %1453 = vmatprep.subr.bf16.mxu0 0
          %1454 = vmatpush1.bf16.msra.mxu0 0
          %1455 = vmatprep.subr.bf16.mxu0 0
          %1456 = vmatpush1.bf16.msra.mxu0 0
          %1457 = vmatprep.subr.bf16.mxu0 0
          %1458 = vmatpush1.bf16.msra.mxu0 0
          %1459 = vmatprep.mubr.bf16.mxu0 0
          %1460 = vmatmul.mubr.bf16.gmra.mrb[0].mxu0 %v1425
          %v1461 = vpop.f32.mrb[0].mxu0
          %v1462 = vadd.f32 0.0, %v1461
          %v1463 = vpop.f32.mrb[0].mxu0
          %v1464 = vpop.f32.mrb[0].mxu0
          %v1465 = vadd.f32 0.0, %v1464
          %v1466 = vpop.f32.mrb[0].mxu0
          %1467 = vdwg.mxu0
          %v1469 = vsel %vm902, %v1423, 0
          %1471 = vmatprep.subr.bf16.mxu0 0
          %1472 = vmatpush1.bf16.msra.mxu0 %v1164
          %1473 = vmatprep.subr.bf16.mxu0 0
          %1474 = vmatpush1.bf16.msra.mxu0 0
          %1475 = vmatprep.subr.bf16.mxu0 0
          %1476 = vmatpush1.bf16.msra.mxu0 0
          %1477 = vmatprep.subr.bf16.mxu0 0
          %1478 = vmatpush1.bf16.msra.mxu0 0
          %1479 = vmatprep.subr.bf16.mxu0 0
          %1480 = vmatpush1.bf16.msra.mxu0 0
          %1481 = vmatprep.subr.bf16.mxu0 0
          %1482 = vmatpush1.bf16.msra.mxu0 0
          %1483 = vmatprep.subr.bf16.mxu0 0
          %1484 = vmatpush1.bf16.msra.mxu0 0
          %1485 = vmatprep.subr.bf16.mxu0 0
          %1486 = vmatpush1.bf16.msra.mxu0 0
          %1487 = vmatprep.subr.bf16.mxu0 0
          %1488 = vmatpush1.bf16.msra.mxu0 0
          %1489 = vmatprep.subr.bf16.mxu0 0
          %1490 = vmatpush1.bf16.msra.mxu0 0
          %1491 = vmatprep.subr.bf16.mxu0 0
          %1492 = vmatpush1.bf16.msra.mxu0 0
          %1493 = vmatprep.subr.bf16.mxu0 0
          %1494 = vmatpush1.bf16.msra.mxu0 0
          %1495 = vmatprep.subr.bf16.mxu0 0
          %1496 = vmatpush1.bf16.msra.mxu0 0
          %1497 = vmatprep.subr.bf16.mxu0 0
          %1498 = vmatpush1.bf16.msra.mxu0 0
          %1499 = vmatprep.subr.bf16.mxu0 0
          %1500 = vmatpush1.bf16.msra.mxu0 0
          %1501 = vmatprep.subr.bf16.mxu0 0
          %1502 = vmatpush1.bf16.msra.mxu0 0
          %1503 = vmatprep.mubr.bf16.mxu0 0
          %1504 = vmatmul.mubr.bf16.gmra.mrb[0].mxu0 %v1469
          %v1505 = vpop.f32.mrb[0].mxu0
          %v1506 = vadd.f32 0.0, %v1505
          %v1507 = vpop.f32.mrb[0].mxu0
          %v1508 = vpop.f32.mrb[0].mxu0
          %v1509 = vadd.f32 0.0, %v1508
          %v1510 = vpop.f32.mrb[0].mxu0
          %1511 = vdwg.mxu0
          %1512 = vst [vmem:[#allocation2] sm:$0xff] %v1462
          %1513 = vst [vmem:[#allocation2 + $0x8] sm:$0xff] %v1465
          %1514 = vst [vmem:[#allocation2 + $0x10] sm:$0xff] %v1506
          %1515 = vst [vmem:[#allocation2 + $0x18] sm:$0xff] %v1509
          %vm1516 = vcmask 7168
          %1517 = vst.msk [vmem:[#allocation3] sm:$0xff] %vm1516, -1e+30
          %1518 = vst.msk [vmem:[#allocation3 + $0x8] sm:$0xff] %vm1516, -1e+30
          %1519 = vst.msk [vmem:[#allocation3 + $0x10] sm:$0xff] %vm1516, -1e+30
          %1520 = vst.msk [vmem:[#allocation3 + $0x18] sm:$0xff] %vm1516, -1e+30
          %1521 = vst.msk [vmem:[#allocation4] sm:$0xff] %vm1516, 0.0
          %1522 = vst.msk [vmem:[#allocation4 + $0x8] sm:$0xff] %vm1516, 0.0
          %1523 = vst.msk [vmem:[#allocation4 + $0x10] sm:$0xff] %vm1516, 0.0
          %1524 = vst.msk [vmem:[#allocation4 + $0x18] sm:$0xff] %vm1516, 0.0
          %1525 = vst.msk [vmem:[#allocation5] sm:$0xff] %vm1516, 0.0
          %1526 = vst.msk [vmem:[#allocation5 + $0x8] sm:$0xff] %vm1516, 0.0
          %1527 = vst.msk [vmem:[#allocation5 + $0x10] sm:$0xff] %vm1516, 0.0
          %1528 = vst.msk [vmem:[#allocation5 + $0x18] sm:$0xff] %vm1516, 0.0
        $region98: #{text2sql_loss.1} parent=89 // pred_fallthru
          _
        %v1529 = vld [vmem:[#allocation2] sm:$0xff]
        %v1530 = vld [vmem:[#allocation2 + $0x8] sm:$0xff]
        %v1531 = vld [vmem:[#allocation2 + $0x10] sm:$0xff]
        %v1532 = vld [vmem:[#allocation2 + $0x18] sm:$0xff]
        %v1533 = vpack.c.bf16 %v1530, %v1529
        %v1534 = vpack.c.bf16 %v1532, %v1531
        %v1535 = vld [vmem:[%s448] sm:$0xff]
        %v1536 = vld [vmem:[%s448 + $0x8] sm:$0xff]
        %v1537 = vld [vmem:[%s448 + $0x10] sm:$0xff]
        %v1538 = vld [vmem:[%s448 + $0x18] sm:$0xff]
        %v1539 = vld [vmem:[%s448 + $0x20] sm:$0xff]
        %v1540 = vld [vmem:[%s448 + $0x28] sm:$0xff]
        %v1541 = vld [vmem:[%s448 + $0x30] sm:$0xff]
        %v1542 = vld [vmem:[%s448 + $0x38] sm:$0xff]
        %v1543 = vld [vmem:[%s448 + $0x40] sm:$0xff]
        %v1544 = vld [vmem:[%s448 + $0x48] sm:$0xff]
        %v1545 = vld [vmem:[%s448 + $0x50] sm:$0xff]
        %v1546 = vld [vmem:[%s448 + $0x58] sm:$0xff]
        %v1547 = vld [vmem:[%s448 + $0x60] sm:$0xff]
        %v1548 = vld [vmem:[%s448 + $0x68] sm:$0xff]
        %v1549 = vld [vmem:[%s448 + $0x70] sm:$0xff]
        %v1550 = vld [vmem:[%s448 + $0x78] sm:$0xff]
        %v1551 = vld [vmem:[%s526] sm:$0x3]
        %v1553 = vlaneseq
        %v1554 = vshrl.u32 %v1553, 7
        %v1555 = vsub.s32 0, %v1554
        %v1556 = vrot.slane %v1551, %v1555
        %v1557 = vlaneseq
        %v1558 = vshrl.u32 %v1557, 7
        %v1559 = vsub.s32 1, %v1558
        %v1560 = vrot.slane %v1551, %v1559
        %v1579 = vunpack.c.l.b16 %v1535
        %v1580 = vunpack.c.h.b16 %v1535
        %v1581 = vunpack.c.l.b16 %v1536
        %v1582 = vunpack.c.h.b16 %v1536
        %v1583 = vunpack.c.l.b16 %v1537
        %v1584 = vunpack.c.h.b16 %v1537
        %v1585 = vunpack.c.l.b16 %v1538
        %v1586 = vunpack.c.h.b16 %v1538
        %v1587 = vunpack.c.l.b16 %v1539
        %v1588 = vunpack.c.h.b16 %v1539
        %v1589 = vunpack.c.l.b16 %v1540
        %v1590 = vunpack.c.h.b16 %v1540
        %v1591 = vunpack.c.l.b16 %v1541
        %v1592 = vunpack.c.h.b16 %v1541
        %v1593 = vunpack.c.l.b16 %v1542
        %v1594 = vunpack.c.h.b16 %v1542
        %v1595 = vunpack.c.l.b16 %v1543
        %v1596 = vunpack.c.h.b16 %v1543
        %v1597 = vunpack.c.l.b16 %v1544
        %v1598 = vunpack.c.h.b16 %v1544
        %v1599 = vunpack.c.l.b16 %v1545
        %v1600 = vunpack.c.h.b16 %v1545
        %v1601 = vunpack.c.l.b16 %v1546
        %v1602 = vunpack.c.h.b16 %v1546
        %v1603 = vunpack.c.l.b16 %v1547
        %v1604 = vunpack.c.h.b16 %v1547
        %v1605 = vunpack.c.l.b16 %v1548
        %v1606 = vunpack.c.h.b16 %v1548
        %v1607 = vunpack.c.l.b16 %v1549
        %v1608 = vunpack.c.h.b16 %v1549
        %v1609 = vunpack.c.l.b16 %v1550
        %v1610 = vunpack.c.h.b16 %v1550
        %v1611 = vpack.c.b16 %v1581, %v1579
        %v1612 = vpack.c.b16 %v1582, %v1580
        %v1613 = vpack.c.b16 %v1585, %v1583
        %v1614 = vpack.c.b16 %v1586, %v1584
        %v1615 = vpack.c.b16 %v1589, %v1587
        %v1616 = vpack.c.b16 %v1590, %v1588
        %v1617 = vpack.c.b16 %v1593, %v1591
        %v1618 = vpack.c.b16 %v1594, %v1592
        %v1619 = vpack.c.b16 %v1597, %v1595
        %v1620 = vpack.c.b16 %v1598, %v1596
        %v1621 = vpack.c.b16 %v1601, %v1599
        %v1622 = vpack.c.b16 %v1602, %v1600
        %v1623 = vpack.c.b16 %v1605, %v1603
        %v1624 = vpack.c.b16 %v1606, %v1604
        %v1625 = vpack.c.b16 %v1609, %v1607
        %v1626 = vpack.c.b16 %v1610, %v1608
        %1643 = vmatprep.subr.bf16.mxu0 %v1612
        %1644 = vmatpush1.bf16.msra.mxu0 %v1611
        %1645 = vmatprep.subr.bf16.mxu0 %v1614
        %1646 = vmatpush1.bf16.msra.mxu0 %v1613
        %1647 = vmatprep.subr.bf16.mxu0 %v1616
        %1648 = vmatpush1.bf16.msra.mxu0 %v1615
        %1649 = vmatprep.subr.bf16.mxu0 %v1618
        %1650 = vmatpush1.bf16.msra.mxu0 %v1617
        %1651 = vmatprep.subr.bf16.mxu0 %v1620
        %1652 = vmatpush1.bf16.msra.mxu0 %v1619
        %1653 = vmatprep.subr.bf16.mxu0 %v1622
        %1654 = vmatpush1.bf16.msra.mxu0 %v1621
        %1655 = vmatprep.subr.bf16.mxu0 %v1624
        %1656 = vmatpush1.bf16.msra.mxu0 %v1623
        %1657 = vmatprep.subr.bf16.mxu0 %v1626
        %1658 = vmatpush1.bf16.msra.mxu0 %v1625
        %1659 = vmatprep.subr.bf16.mxu0 0
        %1660 = vmatpush1.bf16.msra.mxu0 0
        %1661 = vmatprep.subr.bf16.mxu0 0
        %1662 = vmatpush1.bf16.msra.mxu0 0
        %1663 = vmatprep.subr.bf16.mxu0 0
        %1664 = vmatpush1.bf16.msra.mxu0 0
        %1665 = vmatprep.subr.bf16.mxu0 0
        %1666 = vmatpush1.bf16.msra.mxu0 0
        %1667 = vmatprep.subr.bf16.mxu0 0
        %1668 = vmatpush1.bf16.msra.mxu0 0
        %1669 = vmatprep.subr.bf16.mxu0 0
        %1670 = vmatpush1.bf16.msra.mxu0 0
        %1671 = vmatprep.subr.bf16.mxu0 0
        %1672 = vmatpush1.bf16.msra.mxu0 0
        %1673 = vmatprep.subr.bf16.mxu0 0
        %1674 = vmatpush1.bf16.msra.mxu0 0
        %1675 = vmatprep.mubr.bf16.mxu0 0
        %1676 = vmatmul.mubr.bf16.gmra.mrb[0].mxu0 %v1533
        %v1677 = vpop.f32.mrb[0].mxu0
        %v1678 = vadd.f32 %v1556, %v1677
        %v1679 = vpop.f32.mrb[0].mxu0
        %v1680 = vadd.f32 %v1560, %v1679
        %v1681 = vpop.f32.mrb[0].mxu0
        %v1682 = vadd.f32 %v1556, %v1681
        %v1683 = vpop.f32.mrb[0].mxu0
        %v1684 = vadd.f32 %v1560, %v1683
        %1685 = vmatprep.mubr.bf16.mxu0 0
        %1686 = vmatmul.mubr.bf16.gmra.mrb[0].mxu0 %v1534
        %v1687 = vpop.f32.mrb[0].mxu0
        %v1688 = vadd.f32 %v1556, %v1687
        %v1689 = vpop.f32.mrb[0].mxu0
        %v1690 = vadd.f32 %v1560, %v1689
        %v1691 = vpop.f32.mrb[0].mxu0
        %v1692 = vadd.f32 %v1556, %v1691
        %v1693 = vpop.f32.mrb[0].mxu0
        %v1694 = vadd.f32 %v1560, %v1693
        %1695 = vdwg.mxu0
        %v1696 = vld [vmem:[#allocation3] sm:$0xff]
        %v1697 = vld [vmem:[#allocation3 + $0x8] sm:$0xff]
        %v1698 = vld [vmem:[#allocation3 + $0x10] sm:$0xff]
        %v1699 = vld [vmem:[#allocation3 + $0x18] sm:$0xff]
        %v1700 = vmax.f32 %v1678, %v1680
        %1701 = vmax.xlane.f32.xlu0 %v1700
        %v1702 = vpop.xlane.xlu0 %1701
        %v1703 = vmax.f32 %v1682, %v1684
        %1704 = vmax.xlane.f32.xlu0 %v1703
        %v1705 = vpop.xlane.xlu0 %1704
        %v1706 = vmax.f32 %v1688, %v1690
        %1707 = vmax.xlane.f32.xlu0 %v1706
        %v1708 = vpop.xlane.xlu0 %1707
        %v1709 = vmax.f32 %v1692, %v1694
        %1710 = vmax.xlane.f32.xlu0 %v1709
        %v1711 = vpop.xlane.xlu0 %1710
        %v1712 = vmax.f32 %v1696, %v1702
        %v1713 = vmax.f32 %v1697, %v1705
        %v1714 = vmax.f32 %v1698, %v1708
        %v1715 = vmax.f32 %v1699, %v1711
        %v1716 = vsub.f32 %v1696, %v1712
        %v1717 = vsub.f32 %v1697, %v1713
        %v1718 = vsub.f32 %v1698, %v1714
        %v1719 = vsub.f32 %v1699, %v1715
        %v1720 = vmul.f32 %v1716, 1.442695
        %v1721 = vpow.pop %v1720
        %v1722 = vmul.f32 %v1717, 1.442695
        %v1723 = vpow.pop %v1722
        %v1724 = vmul.f32 %v1718, 1.442695
        %v1725 = vpow.pop %v1724
        %v1726 = vmul.f32 %v1719, 1.442695
        %v1727 = vpow.pop %v1726
        %v1728 = vld [vmem:[#allocation4] sm:$0xff]
        %v1729 = vld [vmem:[#allocation4 + $0x8] sm:$0xff]
        %v1730 = vld [vmem:[#allocation4 + $0x10] sm:$0xff]
        %v1731 = vld [vmem:[#allocation4 + $0x18] sm:$0xff]
        %v1732 = vmul.f32 %v1721, %v1728
        %v1733 = vmul.f32 %v1723, %v1729
        %v1734 = vmul.f32 %v1725, %v1730
        %v1735 = vmul.f32 %v1727, %v1731
        %1737 = vset.pattern.permute.xlu0 0
        %1738 = vperm.xlu0 %1737, %v1712
        %v1739 = vpop.permute.xlu0 %1738
        %1742 = vset.pattern.permute.xlu0 0
        %1743 = vperm.xlu0 %1742, %v1713
        %v1744 = vpop.permute.xlu0 %1743
        %1747 = vset.pattern.permute.xlu0 0
        %1748 = vperm.xlu0 %1747, %v1714
        %v1749 = vpop.permute.xlu0 %1748
        %1752 = vset.pattern.permute.xlu0 0
        %1753 = vperm.xlu0 %1752, %v1715
        %v1754 = vpop.permute.xlu0 %1753
        %v1756 = vsub.f32 %v1678, %v1739
        %v1757 = vsub.f32 %v1680, %v1739
        %v1758 = vsub.f32 %v1682, %v1744
        %v1759 = vsub.f32 %v1684, %v1744
        %v1760 = vsub.f32 %v1688, %v1749
        %v1761 = vsub.f32 %v1690, %v1749
        %v1762 = vsub.f32 %v1692, %v1754
        %v1763 = vsub.f32 %v1694, %v1754
        %v1764 = vmul.f32 %v1756, 1.442695
        %v1765 = vpow.pop %v1764
        %v1766 = vmul.f32 %v1757, 1.442695
        %v1767 = vpow.pop %v1766
        %v1768 = vmul.f32 %v1758, 1.442695
        %v1769 = vpow.pop %v1768
        %v1770 = vmul.f32 %v1759, 1.442695
        %v1771 = vpow.pop %v1770
        %v1772 = vmul.f32 %v1760, 1.442695
        %v1773 = vpow.pop %v1772
        %v1774 = vmul.f32 %v1761, 1.442695
        %v1775 = vpow.pop %v1774
        %v1776 = vmul.f32 %v1762, 1.442695
        %v1777 = vpow.pop %v1776
        %v1778 = vmul.f32 %v1763, 1.442695
        %v1779 = vpow.pop %v1778
        %v1780 = vadd.f32 %v1765, %v1767
        %1781 = vadd.xlane.f32.xlu0 %v1780
        %v1782 = vpop.xlane.xlu0 %1781
        %v1783 = vadd.f32 %v1769, %v1771
        %1784 = vadd.xlane.f32.xlu0 %v1783
        %v1785 = vpop.xlane.xlu0 %1784
        %v1786 = vadd.f32 %v1773, %v1775
        %1787 = vadd.xlane.f32.xlu0 %v1786
        %v1788 = vpop.xlane.xlu0 %1787
        %v1789 = vadd.f32 %v1777, %v1779
        %1790 = vadd.xlane.f32.xlu0 %v1789
        %v1791 = vpop.xlane.xlu0 %1790
        %v1792 = vadd.f32 %v1732, %v1782
        %v1793 = vadd.f32 %v1733, %v1785
        %v1794 = vadd.f32 %v1734, %v1788
        %v1795 = vadd.f32 %v1735, %v1791
        %vm1796 = vcmask 7168
        %1797 = vst.msk [vmem:[#allocation4] sm:$0xff] %vm1796, %v1792
        %1798 = vst.msk [vmem:[#allocation4 + $0x8] sm:$0xff] %vm1796, %v1793
        %1799 = vst.msk [vmem:[#allocation4 + $0x10] sm:$0xff] %vm1796, %v1794
        %1800 = vst.msk [vmem:[#allocation4 + $0x18] sm:$0xff] %vm1796, %v1795
        %1801 = vst.msk [vmem:[#allocation3] sm:$0xff] %vm1796, %v1712
        %1802 = vst.msk [vmem:[#allocation3 + $0x8] sm:$0xff] %vm1796, %v1713
        %1803 = vst.msk [vmem:[#allocation3 + $0x10] sm:$0xff] %vm1796, %v1714
        %1804 = vst.msk [vmem:[#allocation3 + $0x18] sm:$0xff] %vm1796, %v1715
        %v1805 = vld [vmem:[%s520] sm:$0xff]
        %v1806 = vld [vmem:[%s520 + $0x8] sm:$0xff]
        %v1807 = vld [vmem:[%s520 + $0x10] sm:$0xff]
        %v1808 = vld [vmem:[%s520 + $0x18] sm:$0xff]
        %s1809 = smul.u32 %s25, 256
        %v1810 = vlaneseq
        %v1811 = vand.u32 %v1810, 127
        %v1812 = vadd.s32 %v1811, 128
        %v1813 = vstv %s1809
        %v1814 = vadd.s32 %v1813, %v1811
        %v1815 = vadd.s32 %v1813, %v1812
        %v1816 = vld [vmem:[#allocation5] sm:$0xff]
        %v1817 = vld [vmem:[#allocation5 + $0x8] sm:$0xff]
        %v1818 = vld [vmem:[#allocation5 + $0x10] sm:$0xff]
        %v1819 = vld [vmem:[#allocation5 + $0x18] sm:$0xff]
        %1820 = vset.pattern.permute.xlu0 0
        %1821 = vperm.xlu0 %1820, %v1805
        %v1822 = vpop.permute.xlu0 %1821
        %1823 = vset.pattern.permute.xlu0 0
        %1824 = vperm.xlu0 %1823, %v1806
        %v1825 = vpop.permute.xlu0 %1824
        %1826 = vset.pattern.permute.xlu0 0
        %1827 = vperm.xlu0 %1826, %v1807
        %v1828 = vpop.permute.xlu0 %1827
        %1829 = vset.pattern.permute.xlu0 0
        %1830 = vperm.xlu0 %1829, %v1808
        %v1831 = vpop.permute.xlu0 %1830
        %vm1832 = vcmp.eq.s32.totalorder %v1814, %v1822
        %vm1833 = vcmp.eq.s32.totalorder %v1815, %v1822
        %vm1834 = vcmp.eq.s32.totalorder %v1814, %v1825
        %vm1835 = vcmp.eq.s32.totalorder %v1815, %v1825
        %vm1836 = vcmp.eq.s32.totalorder %v1814, %v1828
        %vm1837 = vcmp.eq.s32.totalorder %v1815, %v1828
        %vm1838 = vcmp.eq.s32.totalorder %v1814, %v1831
        %vm1839 = vcmp.eq.s32.totalorder %v1815, %v1831
        %v1840 = vsel %vm1832, %v1678, 0.0
        %v1841 = vsel %vm1833, %v1680, 0.0
        %v1842 = vsel %vm1834, %v1682, 0.0
        %v1843 = vsel %vm1835, %v1684, 0.0
        %v1844 = vsel %vm1836, %v1688, 0.0
        %v1845 = vsel %vm1837, %v1690, 0.0
        %v1846 = vsel %vm1838, %v1692, 0.0
        %v1847 = vsel %vm1839, %v1694, 0.0
        %v1848 = vadd.f32 %v1840, %v1841
        %1849 = vadd.xlane.f32.xlu0 %v1848
        %v1850 = vpop.xlane.xlu0 %1849
        %v1851 = vadd.f32 %v1842, %v1843
        %1852 = vadd.xlane.f32.xlu0 %v1851
        %v1853 = vpop.xlane.xlu0 %1852
        %v1854 = vadd.f32 %v1844, %v1845
        %1855 = vadd.xlane.f32.xlu0 %v1854
        %v1856 = vpop.xlane.xlu0 %1855
        %v1857 = vadd.f32 %v1846, %v1847
        %1858 = vadd.xlane.f32.xlu0 %v1857
        %v1859 = vpop.xlane.xlu0 %1858
        %v1860 = vadd.f32 %v1816, %v1850
        %v1861 = vadd.f32 %v1817, %v1853
        %v1862 = vadd.f32 %v1818, %v1856
        %v1863 = vadd.f32 %v1819, %v1859
        %1864 = vst.msk [vmem:[#allocation5] sm:$0xff] %vm1796, %v1860
        %1865 = vst.msk [vmem:[#allocation5 + $0x8] sm:$0xff] %vm1796, %v1861
        %1866 = vst.msk [vmem:[#allocation5 + $0x10] sm:$0xff] %vm1796, %v1862
        %1867 = vst.msk [vmem:[#allocation5 + $0x18] sm:$0xff] %vm1796, %v1863
        %p1868 = scmp.eq.s32.totalorder %s25, 1
        // Predicated region
        $region99: #{text2sql_loss.1} parent=89 // pred_check
          %p1869 = pneg %p1868
        $region100: #{text2sql_loss.1} parent=89 // pred_check_branch
          %1871 = sbr.rel (%p1869) target = $region102
        $region101: #{text2sql_loss.1} parent=89 // pred_region
          %v1872 = vld [vmem:[#allocation3] sm:$0xff]
          %v1873 = vld [vmem:[#allocation3 + $0x8] sm:$0xff]
          %v1874 = vld [vmem:[#allocation3 + $0x10] sm:$0xff]
          %v1875 = vld [vmem:[#allocation3 + $0x18] sm:$0xff]
          %v1876 = vld [vmem:[#allocation4] sm:$0xff]
          %v1877 = vld [vmem:[#allocation4 + $0x8] sm:$0xff]
          %v1878 = vld [vmem:[#allocation4 + $0x10] sm:$0xff]
          %v1879 = vld [vmem:[#allocation4 + $0x18] sm:$0xff]
          %v1880 = vlog2.pop %v1876
          %v1881 = vmul.f32 %v1880, 0.6931472
          %v1882 = vlog2.pop %v1877
          %v1883 = vmul.f32 %v1882, 0.6931472
          %v1884 = vlog2.pop %v1878
          %v1885 = vmul.f32 %v1884, 0.6931472
          %v1886 = vlog2.pop %v1879
          %v1887 = vmul.f32 %v1886, 0.6931472
          %v1888 = vadd.f32 %v1872, %v1881
          %v1889 = vadd.f32 %v1873, %v1883
          %v1890 = vadd.f32 %v1874, %v1885
          %v1891 = vadd.f32 %v1875, %v1887
          %v1892 = vld [vmem:[#allocation5] sm:$0xff]
          %v1893 = vld [vmem:[#allocation5 + $0x8] sm:$0xff]
          %v1894 = vld [vmem:[#allocation5 + $0x10] sm:$0xff]
          %v1895 = vld [vmem:[#allocation5 + $0x18] sm:$0xff]
          %v1896 = vsub.f32 %v1888, %v1892
          %v1897 = vsub.f32 %v1889, %v1893
          %v1898 = vsub.f32 %v1890, %v1894
          %v1899 = vsub.f32 %v1891, %v1895
          %v1900 = vsel %vm1796, %v1896, 0.0
          %v1901 = vsel %vm1796, %v1897, 0.0
          %v1902 = vadd.f32 %v1900, %v1901
          %v1903 = vsel %vm1796, %v1898, 0.0
          %v1904 = vadd.f32 %v1902, %v1903
          %v1905 = vsel %vm1796, %v1899, 0.0
          %v1906 = vadd.f32 %v1904, %v1905
          %1907 = vadd.xlane.f32.xlu0 %v1906
          %v1908 = vpop.xlane.xlu0 %1907
          %v1909 = vrot.slane %v1908, 4
          %v1910 = vadd.f32 %v1908, %v1909
          %v1911 = vrot.slane %v1910, 2
          %v1912 = vadd.f32 %v1910, %v1911
          %v1913 = vrot.slane %v1912, 1
          %v1914 = vadd.f32 %v1912, %v1913
          %s1915 = vtos %v1914
          %v1916 = vstv %s1915
          %1917 = vst [vmem:[%s530] sm:$0x1] %v1916
        $region102: #{text2sql_loss.1} parent=89 // pred_fallthru
          _
        %p1918 = scmp.lt.s32.totalorder %s24, 1
        %s1919 = scalar_select %p1918, %s24, 1
        %s1920 = scalar_lea.vmem %s9, %s1919
        // Predicated region
        $region103: #{text2sql_loss.1} parent=89 // pred_check
          %p1921 = pneg %p264
        $region104: #{text2sql_loss.1} parent=89 // pred_check_branch
          %1923 = sbr.rel (%p1921) target = $region106
        $region105: #{text2sql_loss.1} parent=89 // pred_region
          _
        $region106: #{text2sql_loss.1} parent=89 // pred_fallthru
          _
      $region90: #{text2sql_loss.1} parent=5 // pred_fallthru
        _
      %p1924 = scmp.le.s32.totalorder 2, %s15
      // Predicated region
      $region107: #{text2sql_loss.1} parent=5 // pred_check
        %p1925 = pneg %p1924
      $region108: #{text2sql_loss.1} parent=5 // pred_check_branch
        %1927 = sbr.rel (%p1925) target = $region110
      $region109: #{text2sql_loss.1} parent=5 // pred_region
        %s1928 = ssub.s32 %s15, 2
        // Predicated region
        $region111: #{text2sql_loss.1} parent=109 // pred_check
          %p1929 = pneg %p270
        $region112: #{text2sql_loss.1} parent=109 // pred_check_branch
          %1931 = sbr.rel (%p1929) target = $region114
        $region113: #{text2sql_loss.1} parent=109 // pred_region
          %p1932 = scmp.lt.s32.totalorder %s26, 1
          %s1933 = scalar_select %p1932, %s26, 1
          %s1934 = scalar_lea.vmem %s9, %s1933
        $region114: #{text2sql_loss.1} parent=109 // pred_fallthru
          _
      $region110: #{text2sql_loss.1} parent=5 // pred_fallthru
        _
    $region6: #{text2sql_loss.1} parent=1 // loop_footer
      %s19 = sadd.s32 1, %s15
    $region7: #{text2sql_loss.1} parent=1 // loop_footer_branch
      %14 = sbr.rel target = $region3
    $region8: #{text2sql_loss.1} parent=1 // loop_exit
      _

</llo_original>
